<compile_context>
chip_gen: v7x
topology: tpu7x:2x2x1
jax: 0.10.0
libtpu: 0.0.40
codegen_flags: <defaults>
</compile_context>

<pallas_src>
import math

import jax
import jax.numpy as jnp
from jax.experimental import pallas as pl

# ----- small synthetic hyperparameters (mirror the shapes the forward implies) -----
STYLEGAN_SIZE = 16
N_STYLES = int(math.log(STYLEGAN_SIZE, 2)) * 2 - 2   # opts.n_styles == 6
LATENT_DIM = 64                                       # 512 in the real model
IMG_IN = 16                                           # encoder input spatial size
IMG_OUT = 32                                          # decoder output spatial size
POOL_OUT = 16                                         # stands in for the 256x256 face_pool target
CAM_DIM = 25                                          # 16 (cam2world) + 9 (intrinsics)


# ---------------------------- Pallas kernel ----------------------------

def _psp_fused_kernel(x_ref, c_ref, enc_w_ref, enc_b_ref,
                      w_codes_ref, w_cam_ref, dec_b_ref,
                      codes_ref, img_ref):
    # codes = flatten(x) @ enc_w + (enc_b + latent_avg)      (bf16 MXU, f32 accumulate)
    codes = (
        jnp.dot(x_ref[...], enc_w_ref[...], preferred_element_type=jnp.float32)
        + enc_b_ref[...]
    )
    codes_ref[...] = codes

    # images_flat = codes @ W_codes + c @ W_cam + dec_b
    # (face_pool has been folded into W_codes / W_cam / dec_b on the host when resize=True)
    img = jnp.dot(codes.astype(jnp.bfloat16), w_codes_ref[...],
                  preferred_element_type=jnp.float32)
    img = img + jnp.dot(c_ref[...], w_cam_ref[...],
                        preferred_element_type=jnp.float32)
    img_ref[...] = img + dec_b_ref[...]


def psp_fused_forward(x_flat, c, enc_w_bf16, enc_b_eff, w_codes_bf16, w_cam_bf16, dec_b):
    """Single-step fused encoder+decoder(+pool) call. All operands fit in VMEM."""
    B = x_flat.shape[0]
    n_codes = enc_w_bf16.shape[1]
    n_img = w_codes_bf16.shape[1]
    codes, img = pl.pallas_call(
        _psp_fused_kernel,
        out_shape=(
            jax.ShapeDtypeStruct((B, n_codes), jnp.float32),   # lane-dense (384)
            jax.ShapeDtypeStruct((B, n_img), jnp.float32),     # lane-dense (768 / 3072)
        ),
    )(
        x_flat.astype(jnp.bfloat16),
        c.astype(jnp.bfloat16),
        enc_w_bf16,
        enc_b_eff,
        w_codes_bf16,
        w_cam_bf16,
        dec_b,
    )
    return codes, img


# ---------------------------- host-side weight prep ----------------------------

def init_params(key):
    k_enc_w, k_enc_b, k_avg, k_dec_w, k_dec_b = jax.random.split(key, 5)
    enc_in = 3 * IMG_IN * IMG_IN
    enc_out = N_STYLES * LATENT_DIM
    dec_in = enc_out + CAM_DIM
    dec_out = 3 * IMG_OUT * IMG_OUT
    return {
        "enc_w": 0.02 * jax.random.normal(k_enc_w, (enc_in, enc_out), jnp.float32),
        "enc_b": 0.02 * jax.random.normal(k_enc_b, (1, enc_out), jnp.float32),
        # TODO(synk): real latent_avg is the mean of 10000 mapped z-samples from EG3D.
        "latent_avg": 0.02 * jax.random.normal(k_avg, (N_STYLES, LATENT_DIM), jnp.float32),
        "dec_w": 0.02 * jax.random.normal(k_dec_w, (dec_in, dec_out), jnp.float32),
        "dec_b": 0.02 * jax.random.normal(k_dec_b, (1, dec_out), jnp.float32),
    }


def prepare_kernel_weights(params, resize=True):
    """Fold latent_avg into the encoder bias and face_pool into the decoder weights;
    split dec_w into an aligned codes path (K=384) and a tiny camera path (K=25);
    cast matmul operands to bf16 for the MXU."""
    enc_b_eff = params["enc_b"] + params["latent_avg"].reshape(1, -1)   # f32

    dec_w = params["dec_w"]
    dec_b = params["dec_b"]
    if resize:
        # AdaptiveAvgPool2d((POOL_OUT, POOL_OUT)) on a (3, IMG_OUT, IMG_OUT) output is an
        # exact 2x2 mean pool here; it is linear in the output pixels, so fold it into
        # the decoder weight/bias columns.
        k = IMG_OUT // POOL_OUT
        dec_in = dec_w.shape[0]
        dec_w = dec_w.reshape(dec_in, 3, POOL_OUT, k, POOL_OUT, k).mean(axis=(3, 5))
        dec_w = dec_w.reshape(dec_in, 3 * POOL_OUT * POOL_OUT)
        dec_b = dec_b.reshape(1, 3, POOL_OUT, k, POOL_OUT, k).mean(axis=(3, 5))
        dec_b = dec_b.reshape(1, 3 * POOL_OUT * POOL_OUT)

    n_codes = N_STYLES * LATENT_DIM
    return {
        "enc_w": params["enc_w"].astype(jnp.bfloat16),
        "enc_b_eff": enc_b_eff,                               # f32 (added post-accumulate)
        "w_codes": dec_w[:n_codes].astype(jnp.bfloat16),      # (384, N) aligned contraction
        "w_cam": dec_w[n_codes:].astype(jnp.bfloat16),        # (25, N) camera side path
        "dec_b": dec_b,                                       # f32
    }


# ---------------------------- pSp forward ----------------------------

def psp_forward(params, x, c, resize=True, return_latents=False):
    """pSp.forward default path (input_code=False, latent_mask=None)."""
    # TODO(synk): latent_mask / inject_latent / alpha mixing and input_code branches are
    # not exercised (None / False defaults in the reference forward).
    B = x.shape[0]
    kw = prepare_kernel_weights(params, resize=resize)
    x_flat = x.reshape(B, -1)
    codes_flat, img_flat = psp_fused_forward(
        x_flat, c, kw["enc_w"], kw["enc_b_eff"], kw["w_codes"], kw["w_cam"], kw["dec_b"]
    )
    out_hw = POOL_OUT if resize else IMG_OUT
    images = img_flat.reshape(B, 3, out_hw, out_hw)
    if return_latents:
        codes = codes_flat.reshape(B, N_STYLES, LATENT_DIM)
        return images, codes
    return images


def psp_forward_reference(params, x, c, resize=True):
    # pure-JAX f32 reference for correctness checking
    B = x.shape[0]
    codes = x.reshape(B, -1) @ params["enc_w"] + params["enc_b"] \
        + params["latent_avg"].reshape(1, -1)
    z = jnp.concatenate([codes, c], axis=1)
    images = (z @ params["dec_w"] + params["dec_b"]).reshape(B, 3, IMG_OUT, IMG_OUT)
    if resize:
        k = IMG_OUT // POOL_OUT
        images = images.reshape(B, 3, POOL_OUT, k, POOL_OUT, k).mean(axis=(3, 5))
    return images, codes.reshape(B, N_STYLES, LATENT_DIM)


if __name__ == "__main__":
    key = jax.random.PRNGKey(0)
    k_params, k_x, k_c = jax.random.split(key, 3)

    params = init_params(k_params)
    x = jax.random.normal(k_x, (2, 3, IMG_IN, IMG_IN), jnp.float32)   # NCHW input image
    c = jax.random.normal(k_c, (2, CAM_DIM), jnp.float32)             # camera params

    images, latents = psp_forward(params, x, c, resize=True, return_latents=True)
    images = jax.block_until_ready(images)
    latents = jax.block_until_ready(latents)

    assert images.shape == (2, 3, POOL_OUT, POOL_OUT), images.shape
    assert latents.shape == (2, N_STYLES, LATENT_DIM), latents.shape

    ref_images, ref_codes = psp_forward_reference(params, x, c, resize=True)
    assert jnp.allclose(images, ref_images, rtol=3e-2, atol=3e-2), "image mismatch vs reference"
    assert jnp.allclose(latents, ref_codes, rtol=3e-2, atol=3e-2), "latent mismatch vs reference"

    # also exercise the non-resized path once
    images_full = jax.block_until_ready(psp_forward(params, x, c, resize=False))
    assert images_full.shape == (2, 3, IMG_OUT, IMG_OUT), images_full.shape

    print("KERNEL_OK")
</pallas_src>

<mosaic_0001>
module attributes {stable_mosaic.version = 11 : i64} {
  func.func @_psp_fused_kernel(%arg0: memref<2x768xbf16, #tpu.memory_space<vmem>>, %arg1: memref<2x25xbf16, #tpu.memory_space<vmem>>, %arg2: memref<768x384xbf16, #tpu.memory_space<vmem>>, %arg3: memref<1x384xf32, #tpu.memory_space<vmem>>, %arg4: memref<384x768xbf16, #tpu.memory_space<vmem>>, %arg5: memref<25x768xbf16, #tpu.memory_space<vmem>>, %arg6: memref<1x768xf32, #tpu.memory_space<vmem>>, %arg7: memref<2x384xf32, #tpu.memory_space<vmem>>, %arg8: memref<2x768xf32, #tpu.memory_space<vmem>>) attributes {dimension_semantics = [], scalar_prefetch = 0 : i64, scratch_operands = 0 : i64, tpu.core_type = #tpu.core_type<tc>} {
    %c0 = arith.constant 0 : index
    %c0_0 = arith.constant 0 : index
    %0 = vector.load %arg0[%c0, %c0_0] : memref<2x768xbf16, #tpu.memory_space<vmem>>, vector<2x768xbf16>
    %c0_1 = arith.constant 0 : index
    %c0_2 = arith.constant 0 : index
    %1 = vector.load %arg2[%c0_1, %c0_2] : memref<768x384xbf16, #tpu.memory_space<vmem>>, vector<768x384xbf16>
    %cst = arith.constant dense<0.000000e+00> : vector<2x384xf32>
    %2 = tpu.matmul %0, %1, %cst {dimension_numbers = #tpu.dot_dimension_numbers<[1], [0], [0], [1], [0, 0, 1, 1], [], []>} : vector<2x768xbf16>, vector<768x384xbf16>, vector<2x384xf32> -> vector<2x384xf32>
    %c0_3 = arith.constant 0 : index
    %c0_4 = arith.constant 0 : index
    %3 = vector.load %arg3[%c0_3, %c0_4] : memref<1x384xf32, #tpu.memory_space<vmem>>, vector<1x384xf32>
    %4 = vector.broadcast %3 : vector<1x384xf32> to vector<2x384xf32>
    %5 = arith.addf %2, %4 : vector<2x384xf32>
    %c0_5 = arith.constant 0 : index
    %c0_6 = arith.constant 0 : index
    %6 = vector.load %arg7[%c0_5, %c0_6] : memref<2x384xf32, #tpu.memory_space<vmem>>, vector<2x384xf32>
    tpu.vector_store %arg7[%c0_5, %c0_6], %5 {strides = array<i32>} : memref<2x384xf32, #tpu.memory_space<vmem>>, vector<2x384xf32>,
    %7 = arith.truncf %5 : vector<2x384xf32> to vector<2x384xbf16>
    %c0_7 = arith.constant 0 : index
    %c0_8 = arith.constant 0 : index
    %8 = vector.load %arg4[%c0_7, %c0_8] : memref<384x768xbf16, #tpu.memory_space<vmem>>, vector<384x768xbf16>
    %cst_9 = arith.constant dense<0.000000e+00> : vector<2x768xf32>
    %9 = tpu.matmul %7, %8, %cst_9 {dimension_numbers = #tpu.dot_dimension_numbers<[1], [0], [0], [1], [0, 0, 1, 1], [], []>} : vector<2x384xbf16>, vector<384x768xbf16>, vector<2x768xf32> -> vector<2x768xf32>
    %c0_10 = arith.constant 0 : index
    %c0_11 = arith.constant 0 : index
    %10 = vector.load %arg1[%c0_10, %c0_11] : memref<2x25xbf16, #tpu.memory_space<vmem>>, vector<2x25xbf16>
    %c0_12 = arith.constant 0 : index
    %c0_13 = arith.constant 0 : index
    %11 = vector.load %arg5[%c0_12, %c0_13] : memref<25x768xbf16, #tpu.memory_space<vmem>>, vector<25x768xbf16>
    %cst_14 = arith.constant dense<0.000000e+00> : vector<2x768xf32>
    %12 = tpu.matmul %10, %11, %cst_14 {dimension_numbers = #tpu.dot_dimension_numbers<[1], [0], [0], [1], [0, 0, 1, 1], [], []>} : vector<2x25xbf16>, vector<25x768xbf16>, vector<2x768xf32> -> vector<2x768xf32>
    %13 = arith.addf %9, %12 : vector<2x768xf32>
    %c0_15 = arith.constant 0 : index
    %c0_16 = arith.constant 0 : index
    %14 = vector.load %arg6[%c0_15, %c0_16] : memref<1x768xf32, #tpu.memory_space<vmem>>, vector<1x768xf32>
    %15 = vector.broadcast %14 : vector<1x768xf32> to vector<2x768xf32>
    %16 = arith.addf %13, %15 : vector<2x768xf32>
    %c0_17 = arith.constant 0 : index
    %c0_18 = arith.constant 0 : index
    %17 = vector.load %arg8[%c0_17, %c0_18] : memref<2x768xf32, #tpu.memory_space<vmem>>, vector<2x768xf32>
    tpu.vector_store %arg8[%c0_17, %c0_18], %16 {strides = array<i32>} : memref<2x768xf32, #tpu.memory_space<vmem>>, vector<2x768xf32>,
    return
  }
}

</mosaic_0001>

<llo_original>
// kernel: tpu_custom_call.1
$region0: #{tpu_custom_call.1}
  #allocation0 [shape = 'u32[]', space=smem, size = 0x4, offset = 0x4, fixed_abs, tag = 'smem constant byte address 0x4 - core index']
  #allocation1 [shape = 'u32[144,128]{1,0:T(1,128)}', space=vmem, size = 0x12000, scoped, tag = 'internal scratch']
  %s0 = inlined_call_operand.hbm [shape: bf16[2,768], index: 0, kind: input, shape index: {}]
  %s1 = inlined_call_operand.vmem [shape: bf16[2,25], index: 1, kind: input, shape index: {}]
  %s2 = inlined_call_operand.hbm [shape: bf16[768,384], index: 2, kind: input, shape index: {}]
  %s3 = inlined_call_operand.vmem [shape: f32[1,384], index: 3, kind: input, shape index: {}]
  %s4 = inlined_call_operand.hbm [shape: bf16[384,768], index: 4, kind: input, shape index: {}]
  %s5 = inlined_call_operand.hbm [shape: bf16[25,768], index: 5, kind: input, shape index: {}]
  %s6 = inlined_call_operand.vmem [shape: f32[1,768], index: 6, kind: input, shape index: {}]
  %s7 = inlined_call_operand.hbm [shape: f32[2,384], index: 7, kind: output, shape index: {0}]
  %s8 = inlined_call_operand.hbm [shape: f32[2,768], index: 8, kind: output, shape index: {1}]
  %9 = xla_tuple %s7, %s8
  %s10 = sld [smem:[#allocation0]]
  $region62: #{tpu_custom_call.1} parent=0
    _
  %s12 = ssub.s32 1, %s10
  %s13 = scalar_select 0, %s12, %s10
  $region1: #{tpu_custom_call.1} parent=0
    #allocation2 [shape = 'u8[3072]{0}', space=vmem, size = 0xc00, scoped, tag = 'input window, operand 0, single buffered']
    #allocation3 [shape = 's32[1]{0}', space=sflag, size = 0x4, scoped, tag = 'scoped memory for tpu_custom_call.1']
    #allocation4 [shape = 's32[1]{0}', space=sflag, size = 0x4, scoped, tag = 'scoped memory for tpu_custom_call.1']
    #allocation5 [shape = 'u8[589824]{0}', space=vmem, size = 0x90000, scoped, tag = 'input window, operand 2, single buffered']
    #allocation6 [shape = 's32[1]{0}', space=sflag, size = 0x4, scoped, tag = 'scoped memory for tpu_custom_call.1']
    #allocation7 [shape = 'u8[589824]{0}', space=vmem, size = 0x90000, scoped, tag = 'input window, operand 4, single buffered']
    #allocation8 [shape = 'u8[49152]{0}', space=vmem, size = 0xc000, scoped, tag = 'input window, operand 5, single buffered']
    #allocation9 [shape = 's32[1]{0}', space=sflag, size = 0x4, scoped, tag = 'scoped memory for tpu_custom_call.1']
    #allocation10 [shape = 'u8[3072]{0}', space=vmem, size = 0xc00, scoped, tag = 'output window, operand 0, single buffered']
    #allocation11 [shape = 'u8[6144]{0}', space=vmem, size = 0x1800, scoped, tag = 'output window, operand 1, single buffered']
    #allocation12 [shape = 's32[1]{0}', space=sflag, size = 0x4, scoped, tag = 'scoped memory for tpu_custom_call.1']
    %14 = vsyncpa [#allocation3], 0
    %15 = vsyncpa [#allocation6], 0
    %16 = vsyncpa [#allocation9], 0
    %17 = vsyncpa [#allocation4], 0
    %18 = vsyncpa [#allocation12], 0
    // Predicated region
    $region2: #{tpu_custom_call.1} parent=1 // pred_check
      _
    $region3: #{tpu_custom_call.1} parent=1 // pred_check_branch
      %20 = sbr.rel (0) target = $region5
    $region4: #{tpu_custom_call.1} parent=1 // pred_region
      %s22 = ssub.s32 96, 96
      %23 = vsyncadd [#allocation3], %s22
      %s25 = sshll.u32 [#allocation2], 4
      %s26 = int_to_ptr.vmem [resolvable:$true] %s25
      %28 = dma.hbm_to_vmem [thread:$0]  %s0, 96, %s26, [#allocation3]
    $region5: #{tpu_custom_call.1} parent=1 // pred_fallthru
      _
    // Predicated region
    $region6: #{tpu_custom_call.1} parent=1 // pred_check
      _
    $region7: #{tpu_custom_call.1} parent=1 // pred_check_branch
      %30 = sbr.rel (0) target = $region9
    $region8: #{tpu_custom_call.1} parent=1 // pred_region
      _
    $region9: #{tpu_custom_call.1} parent=1 // pred_fallthru
      _
    // Predicated region
    $region10: #{tpu_custom_call.1} parent=1 // pred_check
      _
    $region11: #{tpu_custom_call.1} parent=1 // pred_check_branch
      %32 = sbr.rel (0) target = $region13
    $region12: #{tpu_custom_call.1} parent=1 // pred_region
      %s34 = ssub.s32 18432, 18432
      %35 = vsyncadd [#allocation6], %s34
      %s36 = sshll.u32 [#allocation5], 4
      %s37 = int_to_ptr.vmem [resolvable:$true] %s36
      %42 = dma.hbm_to_vmem [thread:$0]  %s2, 18432, %s37, [#allocation6], 192, 192, 12
    $region13: #{tpu_custom_call.1} parent=1 // pred_fallthru
      _
    // Predicated region
    $region14: #{tpu_custom_call.1} parent=1 // pred_check
      _
    $region15: #{tpu_custom_call.1} parent=1 // pred_check_branch
      %44 = sbr.rel (0) target = $region17
    $region16: #{tpu_custom_call.1} parent=1 // pred_region
      _
    $region17: #{tpu_custom_call.1} parent=1 // pred_fallthru
      _
    // Predicated region
    $region18: #{tpu_custom_call.1} parent=1 // pred_check
      _
    $region19: #{tpu_custom_call.1} parent=1 // pred_check_branch
      %46 = sbr.rel (0) target = $region21
    $region20: #{tpu_custom_call.1} parent=1 // pred_region
      %s48 = ssub.s32 18432, 18432
      %49 = vsyncadd [#allocation6], %s48
      %s50 = sshll.u32 [#allocation7], 4
      %s51 = int_to_ptr.vmem [resolvable:$true] %s50
      %56 = dma.hbm_to_vmem [thread:$0]  %s4, 18432, %s51, [#allocation6], 384, 384, 24
    $region21: #{tpu_custom_call.1} parent=1 // pred_fallthru
      _
    // Predicated region
    $region22: #{tpu_custom_call.1} parent=1 // pred_check
      _
    $region23: #{tpu_custom_call.1} parent=1 // pred_check_branch
      %58 = sbr.rel (0) target = $region25
    $region24: #{tpu_custom_call.1} parent=1 // pred_region
      %s60 = ssub.s32 1536, 1536
      %61 = vsyncadd [#allocation9], %s60
      %s62 = sshll.u32 [#allocation8], 4
      %s63 = int_to_ptr.vmem [resolvable:$true] %s62
      %68 = dma.hbm_to_vmem [thread:$0]  %s5, 1536, %s63, [#allocation9], 384, 384, 24
    $region25: #{tpu_custom_call.1} parent=1 // pred_fallthru
      _
    // Predicated region
    $region26: #{tpu_custom_call.1} parent=1 // pred_check
      _
    $region27: #{tpu_custom_call.1} parent=1 // pred_check_branch
      %70 = sbr.rel (0) target = $region29
    $region28: #{tpu_custom_call.1} parent=1 // pred_region
      _
    $region29: #{tpu_custom_call.1} parent=1 // pred_fallthru
      _
    // Predicated region
    $region30: #{tpu_custom_call.1} parent=1 // pred_check
      _
    $region31: #{tpu_custom_call.1} parent=1 // pred_check_branch
      %72 = sbr.rel (0) target = $region33
    $region32: #{tpu_custom_call.1} parent=1 // pred_region
      %73 = dma.done [#allocation3], 96
    $region33: #{tpu_custom_call.1} parent=1 // pred_fallthru
      _
    // Predicated region
    $region34: #{tpu_custom_call.1} parent=1 // pred_check
      _
    $region35: #{tpu_custom_call.1} parent=1 // pred_check_branch
      %75 = sbr.rel (0) target = $region37
    $region36: #{tpu_custom_call.1} parent=1 // pred_region
      %76 = dma.done [#allocation6], 18432
    $region37: #{tpu_custom_call.1} parent=1 // pred_fallthru
      _
    // Predicated region
    $region38: #{tpu_custom_call.1} parent=1 // pred_check
      _
    $region39: #{tpu_custom_call.1} parent=1 // pred_check_branch
      %78 = sbr.rel (0) target = $region41
    $region40: #{tpu_custom_call.1} parent=1 // pred_region
      %79 = dma.done [#allocation6], 18432
    $region41: #{tpu_custom_call.1} parent=1 // pred_fallthru
      _
    // Predicated region
    $region42: #{tpu_custom_call.1} parent=1 // pred_check
      _
    $region43: #{tpu_custom_call.1} parent=1 // pred_check_branch
      %81 = sbr.rel (0) target = $region45
    $region44: #{tpu_custom_call.1} parent=1 // pred_region
      %82 = dma.done [#allocation9], 1536
    $region45: #{tpu_custom_call.1} parent=1 // pred_fallthru
      _
    %v84 = vld [vmem:[#allocation2] sm:$0x3f]
    %v85 = vld [vmem:[#allocation5] sm:$0xff]
    %v86 = vld [vmem:[#allocation5 + $0x8] sm:$0xf]
    %v87 = vld [vmem:[#allocation5 + $0xc] sm:$0xff]
    %v88 = vld [vmem:[#allocation5 + $0x14] sm:$0xf]
    %v89 = vld [vmem:[#allocation5 + $0x18] sm:$0xff]
    %v90 = vld [vmem:[#allocation5 + $0x20] sm:$0xf]
    %v91 = vld [vmem:[#allocation5 + $0x24] sm:$0xff]
    %v92 = vld [vmem:[#allocation5 + $0x2c] sm:$0xf]
    %v93 = vld [vmem:[#allocation5 + $0x30] sm:$0xff]
    %v94 = vld [vmem:[#allocation5 + $0x38] sm:$0xf]
    %v95 = vld [vmem:[#allocation5 + $0x3c] sm:$0xff]
    %v96 = vld [vmem:[#allocation5 + $0x44] sm:$0xf]
    %v97 = vld [vmem:[#allocation5 + $0x48] sm:$0xff]
    %v98 = vld [vmem:[#allocation5 + $0x50] sm:$0xf]
    %v99 = vld [vmem:[#allocation5 + $0x54] sm:$0xff]
    %v100 = vld [vmem:[#allocation5 + $0x5c] sm:$0xf]
    %v101 = vld [vmem:[#allocation5 + $0x60] sm:$0xff]
    %v102 = vld [vmem:[#allocation5 + $0x68] sm:$0xf]
    %v103 = vld [vmem:[#allocation5 + $0x6c] sm:$0xff]
    %v104 = vld [vmem:[#allocation5 + $0x74] sm:$0xf]
    %v105 = vld [vmem:[#allocation5 + $0x78] sm:$0xff]
    %v106 = vld [vmem:[#allocation5 + $0x80] sm:$0xf]
    %v107 = vld [vmem:[#allocation5 + $0x84] sm:$0xff]
    %v108 = vld [vmem:[#allocation5 + $0x8c] sm:$0xf]
    %v109 = vld [vmem:[#allocation5 + $0x90] sm:$0xff]
    %v110 = vld [vmem:[#allocation5 + $0x98] sm:$0xf]
    %v111 = vld [vmem:[#allocation5 + $0x9c] sm:$0xff]
    %v112 = vld [vmem:[#allocation5 + $0xa4] sm:$0xf]
    %v113 = vld [vmem:[#allocation5 + $0xa8] sm:$0xff]
    %v114 = vld [vmem:[#allocation5 + $0xb0] sm:$0xf]
    %v115 = vld [vmem:[#allocation5 + $0xb4] sm:$0xff]
    %v116 = vld [vmem:[#allocation5 + $0xbc] sm:$0xf]
    %v117 = vld [vmem:[#allocation5 + $0xc0] sm:$0xff]
    %v118 = vld [vmem:[#allocation5 + $0xc8] sm:$0xf]
    %v119 = vld [vmem:[#allocation5 + $0xcc] sm:$0xff]
    %v120 = vld [vmem:[#allocation5 + $0xd4] sm:$0xf]
    %v121 = vld [vmem:[#allocation5 + $0xd8] sm:$0xff]
    %v122 = vld [vmem:[#allocation5 + $0xe0] sm:$0xf]
    %v123 = vld [vmem:[#allocation5 + $0xe4] sm:$0xff]
    %v124 = vld [vmem:[#allocation5 + $0xec] sm:$0xf]
    %v125 = vld [vmem:[#allocation5 + $0xf0] sm:$0xff]
    %v126 = vld [vmem:[#allocation5 + $0xf8] sm:$0xf]
    %v127 = vld [vmem:[#allocation5 + $0xfc] sm:$0xff]
    %v128 = vld [vmem:[#allocation5 + $0x104] sm:$0xf]
    %v129 = vld [vmem:[#allocation5 + $0x108] sm:$0xff]
    %v130 = vld [vmem:[#allocation5 + $0x110] sm:$0xf]
    %v131 = vld [vmem:[#allocation5 + $0x114] sm:$0xff]
    %v132 = vld [vmem:[#allocation5 + $0x11c] sm:$0xf]
    %v133 = vld [vmem:[#allocation5 + $0x120] sm:$0xff]
    %v134 = vld [vmem:[#allocation5 + $0x128] sm:$0xf]
    %v135 = vld [vmem:[#allocation5 + $0x12c] sm:$0xff]
    %v136 = vld [vmem:[#allocation5 + $0x134] sm:$0xf]
    %v137 = vld [vmem:[#allocation5 + $0x138] sm:$0xff]
    %v138 = vld [vmem:[#allocation5 + $0x140] sm:$0xf]
    %v139 = vld [vmem:[#allocation5 + $0x144] sm:$0xff]
    %v140 = vld [vmem:[#allocation5 + $0x14c] sm:$0xf]
    %v141 = vld [vmem:[#allocation5 + $0x150] sm:$0xff]
    %v142 = vld [vmem:[#allocation5 + $0x158] sm:$0xf]
    %v143 = vld [vmem:[#allocation5 + $0x15c] sm:$0xff]
    %v144 = vld [vmem:[#allocation5 + $0x164] sm:$0xf]
    %v145 = vld [vmem:[#allocation5 + $0x168] sm:$0xff]
    %v146 = vld [vmem:[#allocation5 + $0x170] sm:$0xf]
    %v147 = vld [vmem:[#allocation5 + $0x174] sm:$0xff]
    %v148 = vld [vmem:[#allocation5 + $0x17c] sm:$0xf]
    %v149 = vld [vmem:[#allocation5 + $0x180] sm:$0xff]
    %v150 = vld [vmem:[#allocation5 + $0x188] sm:$0xf]
    %v151 = vld [vmem:[#allocation5 + $0x18c] sm:$0xff]
    %v152 = vld [vmem:[#allocation5 + $0x194] sm:$0xf]
    %v153 = vld [vmem:[#allocation5 + $0x198] sm:$0xff]
    %v154 = vld [vmem:[#allocation5 + $0x1a0] sm:$0xf]
    %v155 = vld [vmem:[#allocation5 + $0x1a4] sm:$0xff]
    %v156 = vld [vmem:[#allocation5 + $0x1ac] sm:$0xf]
    %v157 = vld [vmem:[#allocation5 + $0x1b0] sm:$0xff]
    %v158 = vld [vmem:[#allocation5 + $0x1b8] sm:$0xf]
    %v159 = vld [vmem:[#allocation5 + $0x1bc] sm:$0xff]
    %v160 = vld [vmem:[#allocation5 + $0x1c4] sm:$0xf]
    %v161 = vld [vmem:[#allocation5 + $0x1c8] sm:$0xff]
    %v162 = vld [vmem:[#allocation5 + $0x1d0] sm:$0xf]
    %v163 = vld [vmem:[#allocation5 + $0x1d4] sm:$0xff]
    %v164 = vld [vmem:[#allocation5 + $0x1dc] sm:$0xf]
    %v165 = vld [vmem:[#allocation5 + $0x1e0] sm:$0xff]
    %v166 = vld [vmem:[#allocation5 + $0x1e8] sm:$0xf]
    %v167 = vld [vmem:[#allocation5 + $0x1ec] sm:$0xff]
    %v168 = vld [vmem:[#allocation5 + $0x1f4] sm:$0xf]
    %v169 = vld [vmem:[#allocation5 + $0x1f8] sm:$0xff]
    %v170 = vld [vmem:[#allocation5 + $0x200] sm:$0xf]
    %v171 = vld [vmem:[#allocation5 + $0x204] sm:$0xff]
    %v172 = vld [vmem:[#allocation5 + $0x20c] sm:$0xf]
    %v173 = vld [vmem:[#allocation5 + $0x210] sm:$0xff]
    %v174 = vld [vmem:[#allocation5 + $0x218] sm:$0xf]
    %v175 = vld [vmem:[#allocation5 + $0x21c] sm:$0xff]
    %v176 = vld [vmem:[#allocation5 + $0x224] sm:$0xf]
    %v177 = vld [vmem:[#allocation5 + $0x228] sm:$0xff]
    %v178 = vld [vmem:[#allocation5 + $0x230] sm:$0xf]
    %v179 = vld [vmem:[#allocation5 + $0x234] sm:$0xff]
    %v180 = vld [vmem:[#allocation5 + $0x23c] sm:$0xf]
    %v181 = vld [vmem:[#allocation5 + $0x240] sm:$0xff]
    %v182 = vld [vmem:[#allocation5 + $0x248] sm:$0xf]
    %v183 = vld [vmem:[#allocation5 + $0x24c] sm:$0xff]
    %v184 = vld [vmem:[#allocation5 + $0x254] sm:$0xf]
    %v185 = vld [vmem:[#allocation5 + $0x258] sm:$0xff]
    %v186 = vld [vmem:[#allocation5 + $0x260] sm:$0xf]
    %v187 = vld [vmem:[#allocation5 + $0x264] sm:$0xff]
    %v188 = vld [vmem:[#allocation5 + $0x26c] sm:$0xf]
    %v189 = vld [vmem:[#allocation5 + $0x270] sm:$0xff]
    %v190 = vld [vmem:[#allocation5 + $0x278] sm:$0xf]
    %v191 = vld [vmem:[#allocation5 + $0x27c] sm:$0xff]
    %v192 = vld [vmem:[#allocation5 + $0x284] sm:$0xf]
    %v193 = vld [vmem:[#allocation5 + $0x288] sm:$0xff]
    %v194 = vld [vmem:[#allocation5 + $0x290] sm:$0xf]
    %v195 = vld [vmem:[#allocation5 + $0x294] sm:$0xff]
    %v196 = vld [vmem:[#allocation5 + $0x29c] sm:$0xf]
    %v197 = vld [vmem:[#allocation5 + $0x2a0] sm:$0xff]
    %v198 = vld [vmem:[#allocation5 + $0x2a8] sm:$0xf]
    %v199 = vld [vmem:[#allocation5 + $0x2ac] sm:$0xff]
    %v200 = vld [vmem:[#allocation5 + $0x2b4] sm:$0xf]
    %v201 = vld [vmem:[#allocation5 + $0x2b8] sm:$0xff]
    %v202 = vld [vmem:[#allocation5 + $0x2c0] sm:$0xf]
    %v203 = vld [vmem:[#allocation5 + $0x2c4] sm:$0xff]
    %v204 = vld [vmem:[#allocation5 + $0x2cc] sm:$0xf]
    %v205 = vld [vmem:[#allocation5 + $0x2d0] sm:$0xff]
    %v206 = vld [vmem:[#allocation5 + $0x2d8] sm:$0xf]
    %v207 = vld [vmem:[#allocation5 + $0x2dc] sm:$0xff]
    %v208 = vld [vmem:[#allocation5 + $0x2e4] sm:$0xf]
    %v209 = vld [vmem:[#allocation5 + $0x2e8] sm:$0xff]
    %v210 = vld [vmem:[#allocation5 + $0x2f0] sm:$0xf]
    %v211 = vld [vmem:[#allocation5 + $0x2f4] sm:$0xff]
    %v212 = vld [vmem:[#allocation5 + $0x2fc] sm:$0xf]
    %v213 = vld [vmem:[#allocation5 + $0x300] sm:$0xff]
    %v214 = vld [vmem:[#allocation5 + $0x308] sm:$0xf]
    %v215 = vld [vmem:[#allocation5 + $0x30c] sm:$0xff]
    %v216 = vld [vmem:[#allocation5 + $0x314] sm:$0xf]
    %v217 = vld [vmem:[#allocation5 + $0x318] sm:$0xff]
    %v218 = vld [vmem:[#allocation5 + $0x320] sm:$0xf]
    %v219 = vld [vmem:[#allocation5 + $0x324] sm:$0xff]
    %v220 = vld [vmem:[#allocation5 + $0x32c] sm:$0xf]
    %v221 = vld [vmem:[#allocation5 + $0x330] sm:$0xff]
    %v222 = vld [vmem:[#allocation5 + $0x338] sm:$0xf]
    %v223 = vld [vmem:[#allocation5 + $0x33c] sm:$0xff]
    %v224 = vld [vmem:[#allocation5 + $0x344] sm:$0xf]
    %v225 = vld [vmem:[#allocation5 + $0x348] sm:$0xff]
    %v226 = vld [vmem:[#allocation5 + $0x350] sm:$0xf]
    %v227 = vld [vmem:[#allocation5 + $0x354] sm:$0xff]
    %v228 = vld [vmem:[#allocation5 + $0x35c] sm:$0xf]
    %v229 = vld [vmem:[#allocation5 + $0x360] sm:$0xff]
    %v230 = vld [vmem:[#allocation5 + $0x368] sm:$0xf]
    %v231 = vld [vmem:[#allocation5 + $0x36c] sm:$0xff]
    %v232 = vld [vmem:[#allocation5 + $0x374] sm:$0xf]
    %v233 = vld [vmem:[#allocation5 + $0x378] sm:$0xff]
    %v234 = vld [vmem:[#allocation5 + $0x380] sm:$0xf]
    %v235 = vld [vmem:[#allocation5 + $0x384] sm:$0xff]
    %v236 = vld [vmem:[#allocation5 + $0x38c] sm:$0xf]
    %v237 = vld [vmem:[#allocation5 + $0x390] sm:$0xff]
    %v238 = vld [vmem:[#allocation5 + $0x398] sm:$0xf]
    %v239 = vld [vmem:[#allocation5 + $0x39c] sm:$0xff]
    %v240 = vld [vmem:[#allocation5 + $0x3a4] sm:$0xf]
    %v241 = vld [vmem:[#allocation5 + $0x3a8] sm:$0xff]
    %v242 = vld [vmem:[#allocation5 + $0x3b0] sm:$0xf]
    %v243 = vld [vmem:[#allocation5 + $0x3b4] sm:$0xff]
    %v244 = vld [vmem:[#allocation5 + $0x3bc] sm:$0xf]
    %v245 = vld [vmem:[#allocation5 + $0x3c0] sm:$0xff]
    %v246 = vld [vmem:[#allocation5 + $0x3c8] sm:$0xf]
    %v247 = vld [vmem:[#allocation5 + $0x3cc] sm:$0xff]
    %v248 = vld [vmem:[#allocation5 + $0x3d4] sm:$0xf]
    %v249 = vld [vmem:[#allocation5 + $0x3d8] sm:$0xff]
    %v250 = vld [vmem:[#allocation5 + $0x3e0] sm:$0xf]
    %v251 = vld [vmem:[#allocation5 + $0x3e4] sm:$0xff]
    %v252 = vld [vmem:[#allocation5 + $0x3ec] sm:$0xf]
    %v253 = vld [vmem:[#allocation5 + $0x3f0] sm:$0xff]
    %v254 = vld [vmem:[#allocation5 + $0x3f8] sm:$0xf]
    %v255 = vld [vmem:[#allocation5 + $0x3fc] sm:$0xff]
    %v256 = vld [vmem:[#allocation5 + $0x404] sm:$0xf]
    %v257 = vld [vmem:[#allocation5 + $0x408] sm:$0xff]
    %v258 = vld [vmem:[#allocation5 + $0x410] sm:$0xf]
    %v259 = vld [vmem:[#allocation5 + $0x414] sm:$0xff]
    %v260 = vld [vmem:[#allocation5 + $0x41c] sm:$0xf]
    %v261 = vld [vmem:[#allocation5 + $0x420] sm:$0xff]
    %v262 = vld [vmem:[#allocation5 + $0x428] sm:$0xf]
    %v263 = vld [vmem:[#allocation5 + $0x42c] sm:$0xff]
    %v264 = vld [vmem:[#allocation5 + $0x434] sm:$0xf]
    %v265 = vld [vmem:[#allocation5 + $0x438] sm:$0xff]
    %v266 = vld [vmem:[#allocation5 + $0x440] sm:$0xf]
    %v267 = vld [vmem:[#allocation5 + $0x444] sm:$0xff]
    %v268 = vld [vmem:[#allocation5 + $0x44c] sm:$0xf]
    %v269 = vld [vmem:[#allocation5 + $0x450] sm:$0xff]
    %v270 = vld [vmem:[#allocation5 + $0x458] sm:$0xf]
    %v271 = vld [vmem:[#allocation5 + $0x45c] sm:$0xff]
    %v272 = vld [vmem:[#allocation5 + $0x464] sm:$0xf]
    %v273 = vld [vmem:[#allocation5 + $0x468] sm:$0xff]
    %v274 = vld [vmem:[#allocation5 + $0x470] sm:$0xf]
    %v275 = vld [vmem:[#allocation5 + $0x474] sm:$0xff]
    %v276 = vld [vmem:[#allocation5 + $0x47c] sm:$0xf]
    %v277 = vld [vmem:[%s3] sm:$0x7]
    %v279 = vlaneseq
    %v280 = vshrl.u32 %v279, 7
    %v281 = vsub.s32 0, %v280
    %v282 = vrot.slane %v277, %v281
    %v283 = vlaneseq
    %v284 = vshrl.u32 %v283, 7
    %v285 = vsub.s32 1, %v284
    %v286 = vrot.slane %v277, %v285
    %v287 = vlaneseq
    %v288 = vshrl.u32 %v287, 7
    %v289 = vsub.s32 2, %v288
    %v290 = vrot.slane %v277, %v289
    %v295 = vcombine.high %v84, %v84
    %v297 = vunpack.c.l.s4 1966171168
    %v298 = vunpack.c.0.s8 %v297
    %v299 = vlaneseq
    %v300 = vshrl.u32 %v299, 7
    %v301 = vsub.s32 %v298, %v300
    %v302 = vrot.slane %v84, %v301
    %v304 = vunpack.c.l.s4 1966171168
    %v305 = vunpack.c.0.s8 %v304
    %v306 = vlaneseq
    %v307 = vshrl.u32 %v306, 7
    %v308 = vsub.s32 %v305, %v307
    %v309 = vrot.slane %v295, %v308
    %v310 = vcombine.high %v302, %v302
    %v311 = vcombine.high %v309, %v309
    %v313 = vunpack.c.l.s4 1966171168
    %v314 = vunpack.c.0.s8 %v313
    %v315 = vlaneseq
    %v316 = vshrl.u32 %v315, 7
    %v317 = vsub.s32 %v314, %v316
    %v318 = vrot.slane %v302, %v317
    %v320 = vunpack.c.l.s4 1966171168
    %v321 = vunpack.c.0.s8 %v320
    %v322 = vlaneseq
    %v323 = vshrl.u32 %v322, 7
    %v324 = vsub.s32 %v321, %v323
    %v325 = vrot.slane %v309, %v324
    %v327 = vunpack.c.l.s4 1966171168
    %v328 = vunpack.c.0.s8 %v327
    %v329 = vlaneseq
    %v330 = vshrl.u32 %v329, 7
    %v331 = vsub.s32 %v328, %v330
    %v332 = vrot.slane %v310, %v331
    %v334 = vunpack.c.l.s4 1966171168
    %v335 = vunpack.c.0.s8 %v334
    %v336 = vlaneseq
    %v337 = vshrl.u32 %v336, 7
    %v338 = vsub.s32 %v335, %v337
    %v339 = vrot.slane %v311, %v338
    %v340 = vcombine.high %v318, %v318
    %v341 = vcombine.high %v332, %v332
    %v540 = vunpack.c.l.b16 %v85
    %v541 = vunpack.c.h.b16 %v85
    %v542 = vunpack.c.l.b16 %v86
    %v543 = vunpack.c.l.b16 %v87
    %v544 = vunpack.c.h.b16 %v87
    %v545 = vunpack.c.l.b16 %v88
    %v546 = vunpack.c.l.b16 %v89
    %v547 = vunpack.c.h.b16 %v89
    %v548 = vunpack.c.l.b16 %v90
    %v549 = vunpack.c.l.b16 %v91
    %v550 = vunpack.c.h.b16 %v91
    %v551 = vunpack.c.l.b16 %v92
    %v552 = vunpack.c.l.b16 %v93
    %v553 = vunpack.c.h.b16 %v93
    %v554 = vunpack.c.l.b16 %v94
    %v555 = vunpack.c.l.b16 %v95
    %v556 = vunpack.c.h.b16 %v95
    %v557 = vunpack.c.l.b16 %v96
    %v558 = vunpack.c.l.b16 %v97
    %v559 = vunpack.c.h.b16 %v97
    %v560 = vunpack.c.l.b16 %v98
    %v561 = vunpack.c.l.b16 %v99
    %v562 = vunpack.c.h.b16 %v99
    %v563 = vunpack.c.l.b16 %v100
    %v564 = vunpack.c.l.b16 %v101
    %v565 = vunpack.c.h.b16 %v101
    %v566 = vunpack.c.l.b16 %v102
    %v567 = vunpack.c.l.b16 %v103
    %v568 = vunpack.c.h.b16 %v103
    %v569 = vunpack.c.l.b16 %v104
    %v570 = vunpack.c.l.b16 %v105
    %v571 = vunpack.c.h.b16 %v105
    %v572 = vunpack.c.l.b16 %v106
    %v573 = vunpack.c.l.b16 %v107
    %v574 = vunpack.c.h.b16 %v107
    %v575 = vunpack.c.l.b16 %v108
    %v576 = vunpack.c.l.b16 %v109
    %v577 = vunpack.c.h.b16 %v109
    %v578 = vunpack.c.l.b16 %v110
    %v579 = vunpack.c.l.b16 %v111
    %v580 = vunpack.c.h.b16 %v111
    %v581 = vunpack.c.l.b16 %v112
    %v582 = vunpack.c.l.b16 %v113
    %v583 = vunpack.c.h.b16 %v113
    %v584 = vunpack.c.l.b16 %v114
    %v585 = vunpack.c.l.b16 %v115
    %v586 = vunpack.c.h.b16 %v115
    %v587 = vunpack.c.l.b16 %v116
    %v588 = vunpack.c.l.b16 %v117
    %v589 = vunpack.c.h.b16 %v117
    %v590 = vunpack.c.l.b16 %v118
    %v591 = vunpack.c.l.b16 %v119
    %v592 = vunpack.c.h.b16 %v119
    %v593 = vunpack.c.l.b16 %v120
    %v594 = vunpack.c.l.b16 %v121
    %v595 = vunpack.c.h.b16 %v121
    %v596 = vunpack.c.l.b16 %v122
    %v597 = vunpack.c.l.b16 %v123
    %v598 = vunpack.c.h.b16 %v123
    %v599 = vunpack.c.l.b16 %v124
    %v600 = vunpack.c.l.b16 %v125
    %v601 = vunpack.c.h.b16 %v125
    %v602 = vunpack.c.l.b16 %v126
    %v603 = vunpack.c.l.b16 %v127
    %v604 = vunpack.c.h.b16 %v127
    %v605 = vunpack.c.l.b16 %v128
    %v606 = vunpack.c.l.b16 %v129
    %v607 = vunpack.c.h.b16 %v129
    %v608 = vunpack.c.l.b16 %v130
    %v609 = vunpack.c.l.b16 %v131
    %v610 = vunpack.c.h.b16 %v131
    %v611 = vunpack.c.l.b16 %v132
    %v612 = vunpack.c.l.b16 %v133
    %v613 = vunpack.c.h.b16 %v133
    %v614 = vunpack.c.l.b16 %v134
    %v615 = vunpack.c.l.b16 %v135
    %v616 = vunpack.c.h.b16 %v135
    %v617 = vunpack.c.l.b16 %v136
    %v618 = vunpack.c.l.b16 %v137
    %v619 = vunpack.c.h.b16 %v137
    %v620 = vunpack.c.l.b16 %v138
    %v621 = vunpack.c.l.b16 %v139
    %v622 = vunpack.c.h.b16 %v139
    %v623 = vunpack.c.l.b16 %v140
    %v624 = vunpack.c.l.b16 %v141
    %v625 = vunpack.c.h.b16 %v141
    %v626 = vunpack.c.l.b16 %v142
    %v627 = vunpack.c.l.b16 %v143
    %v628 = vunpack.c.h.b16 %v143
    %v629 = vunpack.c.l.b16 %v144
    %v630 = vunpack.c.l.b16 %v145
    %v631 = vunpack.c.h.b16 %v145
    %v632 = vunpack.c.l.b16 %v146
    %v633 = vunpack.c.l.b16 %v147
    %v634 = vunpack.c.h.b16 %v147
    %v635 = vunpack.c.l.b16 %v148
    %v636 = vunpack.c.l.b16 %v149
    %v637 = vunpack.c.h.b16 %v149
    %v638 = vunpack.c.l.b16 %v150
    %v639 = vunpack.c.l.b16 %v151
    %v640 = vunpack.c.h.b16 %v151
    %v641 = vunpack.c.l.b16 %v152
    %v642 = vunpack.c.l.b16 %v153
    %v643 = vunpack.c.h.b16 %v153
    %v644 = vunpack.c.l.b16 %v154
    %v645 = vunpack.c.l.b16 %v155
    %v646 = vunpack.c.h.b16 %v155
    %v647 = vunpack.c.l.b16 %v156
    %v648 = vunpack.c.l.b16 %v157
    %v649 = vunpack.c.h.b16 %v157
    %v650 = vunpack.c.l.b16 %v158
    %v651 = vunpack.c.l.b16 %v159
    %v652 = vunpack.c.h.b16 %v159
    %v653 = vunpack.c.l.b16 %v160
    %v654 = vunpack.c.l.b16 %v161
    %v655 = vunpack.c.h.b16 %v161
    %v656 = vunpack.c.l.b16 %v162
    %v657 = vunpack.c.l.b16 %v163
    %v658 = vunpack.c.h.b16 %v163
    %v659 = vunpack.c.l.b16 %v164
    %v660 = vunpack.c.l.b16 %v165
    %v661 = vunpack.c.h.b16 %v165
    %v662 = vunpack.c.l.b16 %v166
    %v663 = vunpack.c.l.b16 %v167
    %v664 = vunpack.c.h.b16 %v167
    %v665 = vunpack.c.l.b16 %v168
    %v666 = vunpack.c.l.b16 %v169
    %v667 = vunpack.c.h.b16 %v169
    %v668 = vunpack.c.l.b16 %v170
    %v669 = vunpack.c.l.b16 %v171
    %v670 = vunpack.c.h.b16 %v171
    %v671 = vunpack.c.l.b16 %v172
    %v672 = vunpack.c.l.b16 %v173
    %v673 = vunpack.c.h.b16 %v173
    %v674 = vunpack.c.l.b16 %v174
    %v675 = vunpack.c.l.b16 %v175
    %v676 = vunpack.c.h.b16 %v175
    %v677 = vunpack.c.l.b16 %v176
    %v678 = vunpack.c.l.b16 %v177
    %v679 = vunpack.c.h.b16 %v177
    %v680 = vunpack.c.l.b16 %v178
    %v681 = vunpack.c.l.b16 %v179
    %v682 = vunpack.c.h.b16 %v179
    %v683 = vunpack.c.l.b16 %v180
    %v684 = vunpack.c.l.b16 %v181
    %v685 = vunpack.c.h.b16 %v181
    %v686 = vunpack.c.l.b16 %v182
    %v687 = vunpack.c.l.b16 %v183
    %v688 = vunpack.c.h.b16 %v183
    %v689 = vunpack.c.l.b16 %v184
    %v690 = vunpack.c.l.b16 %v185
    %v691 = vunpack.c.h.b16 %v185
    %v692 = vunpack.c.l.b16 %v186
    %v693 = vunpack.c.l.b16 %v187
    %v694 = vunpack.c.h.b16 %v187
    %v695 = vunpack.c.l.b16 %v188
    %v696 = vunpack.c.l.b16 %v189
    %v697 = vunpack.c.h.b16 %v189
    %v698 = vunpack.c.l.b16 %v190
    %v699 = vunpack.c.l.b16 %v191
    %v700 = vunpack.c.h.b16 %v191
    %v701 = vunpack.c.l.b16 %v192
    %v702 = vunpack.c.l.b16 %v193
    %v703 = vunpack.c.h.b16 %v193
    %v704 = vunpack.c.l.b16 %v194
    %v705 = vunpack.c.l.b16 %v195
    %v706 = vunpack.c.h.b16 %v195
    %v707 = vunpack.c.l.b16 %v196
    %v708 = vunpack.c.l.b16 %v197
    %v709 = vunpack.c.h.b16 %v197
    %v710 = vunpack.c.l.b16 %v198
    %v711 = vunpack.c.l.b16 %v199
    %v712 = vunpack.c.h.b16 %v199
    %v713 = vunpack.c.l.b16 %v200
    %v714 = vunpack.c.l.b16 %v201
    %v715 = vunpack.c.h.b16 %v201
    %v716 = vunpack.c.l.b16 %v202
    %v717 = vunpack.c.l.b16 %v203
    %v718 = vunpack.c.h.b16 %v203
    %v719 = vunpack.c.l.b16 %v204
    %v720 = vunpack.c.l.b16 %v205
    %v721 = vunpack.c.h.b16 %v205
    %v722 = vunpack.c.l.b16 %v206
    %v723 = vunpack.c.l.b16 %v207
    %v724 = vunpack.c.h.b16 %v207
    %v725 = vunpack.c.l.b16 %v208
    %v726 = vunpack.c.l.b16 %v209
    %v727 = vunpack.c.h.b16 %v209
    %v728 = vunpack.c.l.b16 %v210
    %v729 = vunpack.c.l.b16 %v211
    %v730 = vunpack.c.h.b16 %v211
    %v731 = vunpack.c.l.b16 %v212
    %v732 = vunpack.c.l.b16 %v213
    %v733 = vunpack.c.h.b16 %v213
    %v734 = vunpack.c.l.b16 %v214
    %v735 = vunpack.c.l.b16 %v215
    %v736 = vunpack.c.h.b16 %v215
    %v737 = vunpack.c.l.b16 %v216
    %v738 = vunpack.c.l.b16 %v217
    %v739 = vunpack.c.h.b16 %v217
    %v740 = vunpack.c.l.b16 %v218
    %v741 = vunpack.c.l.b16 %v219
    %v742 = vunpack.c.h.b16 %v219
    %v743 = vunpack.c.l.b16 %v220
    %v744 = vunpack.c.l.b16 %v221
    %v745 = vunpack.c.h.b16 %v221
    %v746 = vunpack.c.l.b16 %v222
    %v747 = vunpack.c.l.b16 %v223
    %v748 = vunpack.c.h.b16 %v223
    %v749 = vunpack.c.l.b16 %v224
    %v750 = vunpack.c.l.b16 %v225
    %v751 = vunpack.c.h.b16 %v225
    %v752 = vunpack.c.l.b16 %v226
    %v753 = vunpack.c.l.b16 %v227
    %v754 = vunpack.c.h.b16 %v227
    %v755 = vunpack.c.l.b16 %v228
    %v756 = vunpack.c.l.b16 %v229
    %v757 = vunpack.c.h.b16 %v229
    %v758 = vunpack.c.l.b16 %v230
    %v759 = vunpack.c.l.b16 %v231
    %v760 = vunpack.c.h.b16 %v231
    %v761 = vunpack.c.l.b16 %v232
    %v762 = vunpack.c.l.b16 %v233
    %v763 = vunpack.c.h.b16 %v233
    %v764 = vunpack.c.l.b16 %v234
    %v765 = vunpack.c.l.b16 %v235
    %v766 = vunpack.c.h.b16 %v235
    %v767 = vunpack.c.l.b16 %v236
    %v768 = vunpack.c.l.b16 %v237
    %v769 = vunpack.c.h.b16 %v237
    %v770 = vunpack.c.l.b16 %v238
    %v771 = vunpack.c.l.b16 %v239
    %v772 = vunpack.c.h.b16 %v239
    %v773 = vunpack.c.l.b16 %v240
    %v774 = vunpack.c.l.b16 %v241
    %v775 = vunpack.c.h.b16 %v241
    %v776 = vunpack.c.l.b16 %v242
    %v777 = vunpack.c.l.b16 %v243
    %v778 = vunpack.c.h.b16 %v243
    %v779 = vunpack.c.l.b16 %v244
    %v780 = vunpack.c.l.b16 %v245
    %v781 = vunpack.c.h.b16 %v245
    %v782 = vunpack.c.l.b16 %v246
    %v783 = vunpack.c.l.b16 %v247
    %v784 = vunpack.c.h.b16 %v247
    %v785 = vunpack.c.l.b16 %v248
    %v786 = vunpack.c.l.b16 %v249
    %v787 = vunpack.c.h.b16 %v249
    %v788 = vunpack.c.l.b16 %v250
    %v789 = vunpack.c.l.b16 %v251
    %v790 = vunpack.c.h.b16 %v251
    %v791 = vunpack.c.l.b16 %v252
    %v792 = vunpack.c.l.b16 %v253
    %v793 = vunpack.c.h.b16 %v253
    %v794 = vunpack.c.l.b16 %v254
    %v795 = vunpack.c.l.b16 %v255
    %v796 = vunpack.c.h.b16 %v255
    %v797 = vunpack.c.l.b16 %v256
    %v798 = vunpack.c.l.b16 %v257
    %v799 = vunpack.c.h.b16 %v257
    %v800 = vunpack.c.l.b16 %v258
    %v801 = vunpack.c.l.b16 %v259
    %v802 = vunpack.c.h.b16 %v259
    %v803 = vunpack.c.l.b16 %v260
    %v804 = vunpack.c.l.b16 %v261
    %v805 = vunpack.c.h.b16 %v261
    %v806 = vunpack.c.l.b16 %v262
    %v807 = vunpack.c.l.b16 %v263
    %v808 = vunpack.c.h.b16 %v263
    %v809 = vunpack.c.l.b16 %v264
    %v810 = vunpack.c.l.b16 %v265
    %v811 = vunpack.c.h.b16 %v265
    %v812 = vunpack.c.l.b16 %v266
    %v813 = vunpack.c.l.b16 %v267
    %v814 = vunpack.c.h.b16 %v267
    %v815 = vunpack.c.l.b16 %v268
    %v816 = vunpack.c.l.b16 %v269
    %v817 = vunpack.c.h.b16 %v269
    %v818 = vunpack.c.l.b16 %v270
    %v819 = vunpack.c.l.b16 %v271
    %v820 = vunpack.c.h.b16 %v271
    %v821 = vunpack.c.l.b16 %v272
    %v822 = vunpack.c.l.b16 %v273
    %v823 = vunpack.c.h.b16 %v273
    %v824 = vunpack.c.l.b16 %v274
    %v825 = vunpack.c.l.b16 %v275
    %v826 = vunpack.c.h.b16 %v275
    %v827 = vunpack.c.l.b16 %v276
    %v828 = vpack.c.b16 %v543, %v540
    %v829 = vpack.c.b16 %v544, %v541
    %v830 = vpack.c.b16 %v545, %v542
    %v831 = vpack.c.b16 %v549, %v546
    %v832 = vpack.c.b16 %v550, %v547
    %v833 = vpack.c.b16 %v551, %v548
    %v834 = vpack.c.b16 %v555, %v552
    %v835 = vpack.c.b16 %v556, %v553
    %v836 = vpack.c.b16 %v557, %v554
    %v837 = vpack.c.b16 %v561, %v558
    %v838 = vpack.c.b16 %v562, %v559
    %v839 = vpack.c.b16 %v563, %v560
    %v840 = vpack.c.b16 %v567, %v564
    %v841 = vpack.c.b16 %v568, %v565
    %v842 = vpack.c.b16 %v569, %v566
    %v843 = vpack.c.b16 %v573, %v570
    %v844 = vpack.c.b16 %v574, %v571
    %v845 = vpack.c.b16 %v575, %v572
    %v846 = vpack.c.b16 %v579, %v576
    %v847 = vpack.c.b16 %v580, %v577
    %v848 = vpack.c.b16 %v581, %v578
    %v849 = vpack.c.b16 %v585, %v582
    %v850 = vpack.c.b16 %v586, %v583
    %v851 = vpack.c.b16 %v587, %v584
    %v852 = vpack.c.b16 %v591, %v588
    %v853 = vpack.c.b16 %v592, %v589
    %v854 = vpack.c.b16 %v593, %v590
    %v855 = vpack.c.b16 %v597, %v594
    %v856 = vpack.c.b16 %v598, %v595
    %v857 = vpack.c.b16 %v599, %v596
    %v858 = vpack.c.b16 %v603, %v600
    %v859 = vpack.c.b16 %v604, %v601
    %v860 = vpack.c.b16 %v605, %v602
    %v861 = vpack.c.b16 %v609, %v606
    %v862 = vpack.c.b16 %v610, %v607
    %v863 = vpack.c.b16 %v611, %v608
    %v864 = vpack.c.b16 %v615, %v612
    %v865 = vpack.c.b16 %v616, %v613
    %v866 = vpack.c.b16 %v617, %v614
    %v867 = vpack.c.b16 %v621, %v618
    %v868 = vpack.c.b16 %v622, %v619
    %v869 = vpack.c.b16 %v623, %v620
    %v870 = vpack.c.b16 %v627, %v624
    %v871 = vpack.c.b16 %v628, %v625
    %v872 = vpack.c.b16 %v629, %v626
    %v873 = vpack.c.b16 %v633, %v630
    %v874 = vpack.c.b16 %v634, %v631
    %v875 = vpack.c.b16 %v635, %v632
    %v876 = vpack.c.b16 %v639, %v636
    %v877 = vpack.c.b16 %v640, %v637
    %v878 = vpack.c.b16 %v641, %v638
    %v879 = vpack.c.b16 %v645, %v642
    %v880 = vpack.c.b16 %v646, %v643
    %v881 = vpack.c.b16 %v647, %v644
    %v882 = vpack.c.b16 %v651, %v648
    %v883 = vpack.c.b16 %v652, %v649
    %v884 = vpack.c.b16 %v653, %v650
    %v885 = vpack.c.b16 %v657, %v654
    %v886 = vpack.c.b16 %v658, %v655
    %v887 = vpack.c.b16 %v659, %v656
    %v888 = vpack.c.b16 %v663, %v660
    %v889 = vpack.c.b16 %v664, %v661
    %v890 = vpack.c.b16 %v665, %v662
    %v891 = vpack.c.b16 %v669, %v666
    %v892 = vpack.c.b16 %v670, %v667
    %v893 = vpack.c.b16 %v671, %v668
    %v894 = vpack.c.b16 %v675, %v672
    %v895 = vpack.c.b16 %v676, %v673
    %v896 = vpack.c.b16 %v677, %v674
    %v897 = vpack.c.b16 %v681, %v678
    %v898 = vpack.c.b16 %v682, %v679
    %v899 = vpack.c.b16 %v683, %v680
    %v900 = vpack.c.b16 %v687, %v684
    %v901 = vpack.c.b16 %v688, %v685
    %v902 = vpack.c.b16 %v689, %v686
    %v903 = vpack.c.b16 %v693, %v690
    %v904 = vpack.c.b16 %v694, %v691
    %v905 = vpack.c.b16 %v695, %v692
    %v906 = vpack.c.b16 %v699, %v696
    %v907 = vpack.c.b16 %v700, %v697
    %v908 = vpack.c.b16 %v701, %v698
    %v909 = vpack.c.b16 %v705, %v702
    %v910 = vpack.c.b16 %v706, %v703
    %v911 = vpack.c.b16 %v707, %v704
    %v912 = vpack.c.b16 %v711, %v708
    %v913 = vpack.c.b16 %v712, %v709
    %v914 = vpack.c.b16 %v713, %v710
    %v915 = vpack.c.b16 %v717, %v714
    %v916 = vpack.c.b16 %v718, %v715
    %v917 = vpack.c.b16 %v719, %v716
    %v918 = vpack.c.b16 %v723, %v720
    %v919 = vpack.c.b16 %v724, %v721
    %v920 = vpack.c.b16 %v725, %v722
    %v921 = vpack.c.b16 %v729, %v726
    %v922 = vpack.c.b16 %v730, %v727
    %v923 = vpack.c.b16 %v731, %v728
    %v924 = vpack.c.b16 %v735, %v732
    %v925 = vpack.c.b16 %v736, %v733
    %v926 = vpack.c.b16 %v737, %v734
    %v927 = vpack.c.b16 %v741, %v738
    %v928 = vpack.c.b16 %v742, %v739
    %v929 = vpack.c.b16 %v743, %v740
    %v930 = vpack.c.b16 %v747, %v744
    %v931 = vpack.c.b16 %v748, %v745
    %v932 = vpack.c.b16 %v749, %v746
    %v933 = vpack.c.b16 %v753, %v750
    %v934 = vpack.c.b16 %v754, %v751
    %v935 = vpack.c.b16 %v755, %v752
    %v936 = vpack.c.b16 %v759, %v756
    %v937 = vpack.c.b16 %v760, %v757
    %v938 = vpack.c.b16 %v761, %v758
    %v939 = vpack.c.b16 %v765, %v762
    %v940 = vpack.c.b16 %v766, %v763
    %v941 = vpack.c.b16 %v767, %v764
    %v942 = vpack.c.b16 %v771, %v768
    %v943 = vpack.c.b16 %v772, %v769
    %v944 = vpack.c.b16 %v773, %v770
    %v945 = vpack.c.b16 %v777, %v774
    %v946 = vpack.c.b16 %v778, %v775
    %v947 = vpack.c.b16 %v779, %v776
    %v948 = vpack.c.b16 %v783, %v780
    %v949 = vpack.c.b16 %v784, %v781
    %v950 = vpack.c.b16 %v785, %v782
    %v951 = vpack.c.b16 %v789, %v786
    %v952 = vpack.c.b16 %v790, %v787
    %v953 = vpack.c.b16 %v791, %v788
    %v954 = vpack.c.b16 %v795, %v792
    %v955 = vpack.c.b16 %v796, %v793
    %v956 = vpack.c.b16 %v797, %v794
    %v957 = vpack.c.b16 %v801, %v798
    %v958 = vpack.c.b16 %v802, %v799
    %v959 = vpack.c.b16 %v803, %v800
    %v960 = vpack.c.b16 %v807, %v804
    %v961 = vpack.c.b16 %v808, %v805
    %v962 = vpack.c.b16 %v809, %v806
    %v963 = vpack.c.b16 %v813, %v810
    %v964 = vpack.c.b16 %v814, %v811
    %v965 = vpack.c.b16 %v815, %v812
    %v966 = vpack.c.b16 %v819, %v816
    %v967 = vpack.c.b16 %v820, %v817
    %v968 = vpack.c.b16 %v821, %v818
    %v969 = vpack.c.b16 %v825, %v822
    %v970 = vpack.c.b16 %v826, %v823
    %v971 = vpack.c.b16 %v827, %v824
    %1116 = vmatprep.subr.bf16.mxu0 %v829
    %1117 = vmatpush1.bf16.msra.mxu0 %v828
    %1118 = vmatprep.subr.bf16.mxu0 %v832
    %1119 = vmatpush1.bf16.msra.mxu0 %v831
    %1120 = vmatprep.subr.bf16.mxu0 %v835
    %1121 = vmatpush1.bf16.msra.mxu0 %v834
    %1122 = vmatprep.subr.bf16.mxu0 %v838
    %1123 = vmatpush1.bf16.msra.mxu0 %v837
    %1124 = vmatprep.subr.bf16.mxu0 %v841
    %1125 = vmatpush1.bf16.msra.mxu0 %v840
    %1126 = vmatprep.subr.bf16.mxu0 %v844
    %1127 = vmatpush1.bf16.msra.mxu0 %v843
    %1128 = vmatprep.subr.bf16.mxu0 %v847
    %1129 = vmatpush1.bf16.msra.mxu0 %v846
    %1130 = vmatprep.subr.bf16.mxu0 %v850
    %1131 = vmatpush1.bf16.msra.mxu0 %v849
    %1132 = vmatprep.subr.bf16.mxu0 %v853
    %1133 = vmatpush1.bf16.msra.mxu0 %v852
    %1134 = vmatprep.subr.bf16.mxu0 %v856
    %1135 = vmatpush1.bf16.msra.mxu0 %v855
    %1136 = vmatprep.subr.bf16.mxu0 %v859
    %1137 = vmatpush1.bf16.msra.mxu0 %v858
    %1138 = vmatprep.subr.bf16.mxu0 %v862
    %1139 = vmatpush1.bf16.msra.mxu0 %v861
    %1140 = vmatprep.subr.bf16.mxu0 %v865
    %1141 = vmatpush1.bf16.msra.mxu0 %v864
    %1142 = vmatprep.subr.bf16.mxu0 %v868
    %1143 = vmatpush1.bf16.msra.mxu0 %v867
    %1144 = vmatprep.subr.bf16.mxu0 %v871
    %1145 = vmatpush1.bf16.msra.mxu0 %v870
    %1146 = vmatprep.subr.bf16.mxu0 %v874
    %1147 = vmatpush1.bf16.msra.mxu0 %v873
    %1148 = vmatprep.mubr.bf16.mxu0 %v332
    %1149 = vmatmul.mubr.bf16.gmra.mrb[0].mxu0 %v318
    %v1150 = vpop.f32.mrb[0].mxu0
    %v1151 = vadd.f32 %v282, %v1150
    %v1152 = vpop.f32.mrb[0].mxu0
    %v1153 = vadd.f32 %v286, %v1152
    %v1154 = vpop.f32.mrb[0].mxu0
    %v1155 = vpop.f32.mrb[0].mxu0
    %1156 = vdwg.mxu0
    %1157 = vmatprep.subr.bf16.mxu0 %v877
    %1158 = vmatpush1.bf16.msra.mxu0 %v876
    %1159 = vmatprep.subr.bf16.mxu0 %v880
    %1160 = vmatpush1.bf16.msra.mxu0 %v879
    %1161 = vmatprep.subr.bf16.mxu0 %v883
    %1162 = vmatpush1.bf16.msra.mxu0 %v882
    %1163 = vmatprep.subr.bf16.mxu0 %v886
    %1164 = vmatpush1.bf16.msra.mxu0 %v885
    %1165 = vmatprep.subr.bf16.mxu0 %v889
    %1166 = vmatpush1.bf16.msra.mxu0 %v888
    %1167 = vmatprep.subr.bf16.mxu0 %v892
    %1168 = vmatpush1.bf16.msra.mxu0 %v891
    %1169 = vmatprep.subr.bf16.mxu0 %v895
    %1170 = vmatpush1.bf16.msra.mxu0 %v894
    %1171 = vmatprep.subr.bf16.mxu0 %v898
    %1172 = vmatpush1.bf16.msra.mxu0 %v897
    %1173 = vmatprep.subr.bf16.mxu0 %v901
    %1174 = vmatpush1.bf16.msra.mxu0 %v900
    %1175 = vmatprep.subr.bf16.mxu0 %v904
    %1176 = vmatpush1.bf16.msra.mxu0 %v903
    %1177 = vmatprep.subr.bf16.mxu0 %v907
    %1178 = vmatpush1.bf16.msra.mxu0 %v906
    %1179 = vmatprep.subr.bf16.mxu0 %v910
    %1180 = vmatpush1.bf16.msra.mxu0 %v909
    %1181 = vmatprep.subr.bf16.mxu0 %v913
    %1182 = vmatpush1.bf16.msra.mxu0 %v912
    %1183 = vmatprep.subr.bf16.mxu0 %v916
    %1184 = vmatpush1.bf16.msra.mxu0 %v915
    %1185 = vmatprep.subr.bf16.mxu0 %v919
    %1186 = vmatpush1.bf16.msra.mxu0 %v918
    %1187 = vmatprep.subr.bf16.mxu0 %v922
    %1188 = vmatpush1.bf16.msra.mxu0 %v921
    %1189 = vmatprep.mubr.bf16.mxu0 %v341
    %1190 = vmatmul.mubr.bf16.gmra.mrb[0].mxu0 %v340
    %v1191 = vpop.f32.mrb[0].mxu0
    %v1192 = vadd.f32 %v1151, %v1191
    %v1193 = vpop.f32.mrb[0].mxu0
    %v1194 = vadd.f32 %v1153, %v1193
    %v1195 = vpop.f32.mrb[0].mxu0
    %v1196 = vpop.f32.mrb[0].mxu0
    %1197 = vdwg.mxu0
    %1198 = vmatprep.subr.bf16.mxu0 %v925
    %1199 = vmatpush1.bf16.msra.mxu0 %v924
    %1200 = vmatprep.subr.bf16.mxu0 %v928
    %1201 = vmatpush1.bf16.msra.mxu0 %v927
    %1202 = vmatprep.subr.bf16.mxu0 %v931
    %1203 = vmatpush1.bf16.msra.mxu0 %v930
    %1204 = vmatprep.subr.bf16.mxu0 %v934
    %1205 = vmatpush1.bf16.msra.mxu0 %v933
    %1206 = vmatprep.subr.bf16.mxu0 %v937
    %1207 = vmatpush1.bf16.msra.mxu0 %v936
    %1208 = vmatprep.subr.bf16.mxu0 %v940
    %1209 = vmatpush1.bf16.msra.mxu0 %v939
    %1210 = vmatprep.subr.bf16.mxu0 %v943
    %1211 = vmatpush1.bf16.msra.mxu0 %v942
    %1212 = vmatprep.subr.bf16.mxu0 %v946
    %1213 = vmatpush1.bf16.msra.mxu0 %v945
    %1214 = vmatprep.subr.bf16.mxu0 %v949
    %1215 = vmatpush1.bf16.msra.mxu0 %v948
    %1216 = vmatprep.subr.bf16.mxu0 %v952
    %1217 = vmatpush1.bf16.msra.mxu0 %v951
    %1218 = vmatprep.subr.bf16.mxu0 %v955
    %1219 = vmatpush1.bf16.msra.mxu0 %v954
    %1220 = vmatprep.subr.bf16.mxu0 %v958
    %1221 = vmatpush1.bf16.msra.mxu0 %v957
    %1222 = vmatprep.subr.bf16.mxu0 %v961
    %1223 = vmatpush1.bf16.msra.mxu0 %v960
    %1224 = vmatprep.subr.bf16.mxu0 %v964
    %1225 = vmatpush1.bf16.msra.mxu0 %v963
    %1226 = vmatprep.subr.bf16.mxu0 %v967
    %1227 = vmatpush1.bf16.msra.mxu0 %v966
    %1228 = vmatprep.subr.bf16.mxu0 %v970
    %1229 = vmatpush1.bf16.msra.mxu0 %v969
    %1230 = vmatprep.mubr.bf16.mxu0 %v339
    %1231 = vmatmul.mubr.bf16.gmra.mrb[0].mxu0 %v325
    %v1232 = vpop.f32.mrb[0].mxu0
    %v1233 = vadd.f32 %v1192, %v1232
    %v1234 = vpop.f32.mrb[0].mxu0
    %v1235 = vadd.f32 %v1194, %v1234
    %v1236 = vpop.f32.mrb[0].mxu0
    %v1237 = vpop.f32.mrb[0].mxu0
    %1238 = vdwg.mxu0
    %1239 = vmatprep.subr.bf16.mxu0 0
    %1240 = vmatpush1.bf16.msra.mxu0 %v830
    %1241 = vmatprep.subr.bf16.mxu0 0
    %1242 = vmatpush1.bf16.msra.mxu0 %v833
    %1243 = vmatprep.subr.bf16.mxu0 0
    %1244 = vmatpush1.bf16.msra.mxu0 %v836
    %1245 = vmatprep.subr.bf16.mxu0 0
    %1246 = vmatpush1.bf16.msra.mxu0 %v839
    %1247 = vmatprep.subr.bf16.mxu0 0
    %1248 = vmatpush1.bf16.msra.mxu0 %v842
    %1249 = vmatprep.subr.bf16.mxu0 0
    %1250 = vmatpush1.bf16.msra.mxu0 %v845
    %1251 = vmatprep.subr.bf16.mxu0 0
    %1252 = vmatpush1.bf16.msra.mxu0 %v848
    %1253 = vmatprep.subr.bf16.mxu0 0
    %1254 = vmatpush1.bf16.msra.mxu0 %v851
    %1255 = vmatprep.subr.bf16.mxu0 0
    %1256 = vmatpush1.bf16.msra.mxu0 %v854
    %1257 = vmatprep.subr.bf16.mxu0 0
    %1258 = vmatpush1.bf16.msra.mxu0 %v857
    %1259 = vmatprep.subr.bf16.mxu0 0
    %1260 = vmatpush1.bf16.msra.mxu0 %v860
    %1261 = vmatprep.subr.bf16.mxu0 0
    %1262 = vmatpush1.bf16.msra.mxu0 %v863
    %1263 = vmatprep.subr.bf16.mxu0 0
    %1264 = vmatpush1.bf16.msra.mxu0 %v866
    %1265 = vmatprep.subr.bf16.mxu0 0
    %1266 = vmatpush1.bf16.msra.mxu0 %v869
    %1267 = vmatprep.subr.bf16.mxu0 0
    %1268 = vmatpush1.bf16.msra.mxu0 %v872
    %1269 = vmatprep.subr.bf16.mxu0 0
    %1270 = vmatpush1.bf16.msra.mxu0 %v875
    %1271 = vmatprep.mubr.bf16.mxu0 %v332
    %1272 = vmatmul.mubr.bf16.gmra.mrb[0].mxu0 %v318
    %v1273 = vpop.f32.mrb[0].mxu0
    %v1274 = vadd.f32 %v290, %v1273
    %v1275 = vpop.f32.mrb[0].mxu0
    %v1276 = vpop.f32.mrb[0].mxu0
    %v1277 = vpop.f32.mrb[0].mxu0
    %1278 = vdwg.mxu0
    %1279 = vmatprep.subr.bf16.mxu0 0
    %1280 = vmatpush1.bf16.msra.mxu0 %v878
    %1281 = vmatprep.subr.bf16.mxu0 0
    %1282 = vmatpush1.bf16.msra.mxu0 %v881
    %1283 = vmatprep.subr.bf16.mxu0 0
    %1284 = vmatpush1.bf16.msra.mxu0 %v884
    %1285 = vmatprep.subr.bf16.mxu0 0
    %1286 = vmatpush1.bf16.msra.mxu0 %v887
    %1287 = vmatprep.subr.bf16.mxu0 0
    %1288 = vmatpush1.bf16.msra.mxu0 %v890
    %1289 = vmatprep.subr.bf16.mxu0 0
    %1290 = vmatpush1.bf16.msra.mxu0 %v893
    %1291 = vmatprep.subr.bf16.mxu0 0
    %1292 = vmatpush1.bf16.msra.mxu0 %v896
    %1293 = vmatprep.subr.bf16.mxu0 0
    %1294 = vmatpush1.bf16.msra.mxu0 %v899
    %1295 = vmatprep.subr.bf16.mxu0 0
    %1296 = vmatpush1.bf16.msra.mxu0 %v902
    %1297 = vmatprep.subr.bf16.mxu0 0
    %1298 = vmatpush1.bf16.msra.mxu0 %v905
    %1299 = vmatprep.subr.bf16.mxu0 0
    %1300 = vmatpush1.bf16.msra.mxu0 %v908
    %1301 = vmatprep.subr.bf16.mxu0 0
    %1302 = vmatpush1.bf16.msra.mxu0 %v911
    %1303 = vmatprep.subr.bf16.mxu0 0
    %1304 = vmatpush1.bf16.msra.mxu0 %v914
    %1305 = vmatprep.subr.bf16.mxu0 0
    %1306 = vmatpush1.bf16.msra.mxu0 %v917
    %1307 = vmatprep.subr.bf16.mxu0 0
    %1308 = vmatpush1.bf16.msra.mxu0 %v920
    %1309 = vmatprep.subr.bf16.mxu0 0
    %1310 = vmatpush1.bf16.msra.mxu0 %v923
    %1311 = vmatprep.mubr.bf16.mxu0 %v341
    %1312 = vmatmul.mubr.bf16.gmra.mrb[0].mxu0 %v340
    %v1313 = vpop.f32.mrb[0].mxu0
    %v1314 = vadd.f32 %v1274, %v1313
    %v1315 = vpop.f32.mrb[0].mxu0
    %v1316 = vpop.f32.mrb[0].mxu0
    %v1317 = vpop.f32.mrb[0].mxu0
    %1318 = vdwg.mxu0
    %1319 = vmatprep.subr.bf16.mxu0 0
    %1320 = vmatpush1.bf16.msra.mxu0 %v926
    %1321 = vmatprep.subr.bf16.mxu0 0
    %1322 = vmatpush1.bf16.msra.mxu0 %v929
    %1323 = vmatprep.subr.bf16.mxu0 0
    %1324 = vmatpush1.bf16.msra.mxu0 %v932
    %1325 = vmatprep.subr.bf16.mxu0 0
    %1326 = vmatpush1.bf16.msra.mxu0 %v935
    %1327 = vmatprep.subr.bf16.mxu0 0
    %1328 = vmatpush1.bf16.msra.mxu0 %v938
    %1329 = vmatprep.subr.bf16.mxu0 0
    %1330 = vmatpush1.bf16.msra.mxu0 %v941
    %1331 = vmatprep.subr.bf16.mxu0 0
    %1332 = vmatpush1.bf16.msra.mxu0 %v944
    %1333 = vmatprep.subr.bf16.mxu0 0
    %1334 = vmatpush1.bf16.msra.mxu0 %v947
    %1335 = vmatprep.subr.bf16.mxu0 0
    %1336 = vmatpush1.bf16.msra.mxu0 %v950
    %1337 = vmatprep.subr.bf16.mxu0 0
    %1338 = vmatpush1.bf16.msra.mxu0 %v953
    %1339 = vmatprep.subr.bf16.mxu0 0
    %1340 = vmatpush1.bf16.msra.mxu0 %v956
    %1341 = vmatprep.subr.bf16.mxu0 0
    %1342 = vmatpush1.bf16.msra.mxu0 %v959
    %1343 = vmatprep.subr.bf16.mxu0 0
    %1344 = vmatpush1.bf16.msra.mxu0 %v962
    %1345 = vmatprep.subr.bf16.mxu0 0
    %1346 = vmatpush1.bf16.msra.mxu0 %v965
    %1347 = vmatprep.subr.bf16.mxu0 0
    %1348 = vmatpush1.bf16.msra.mxu0 %v968
    %1349 = vmatprep.subr.bf16.mxu0 0
    %1350 = vmatpush1.bf16.msra.mxu0 %v971
    %1351 = vmatprep.mubr.bf16.mxu0 %v339
    %1352 = vmatmul.mubr.bf16.gmra.mrb[0].mxu0 %v325
    %v1353 = vpop.f32.mrb[0].mxu0
    %v1354 = vadd.f32 %v1314, %v1353
    %v1355 = vpop.f32.mrb[0].mxu0
    %v1356 = vpop.f32.mrb[0].mxu0
    %v1357 = vpop.f32.mrb[0].mxu0
    %1358 = vdwg.mxu0
    %v1362 = vcombine.low %v1233, %v1235
    %v1364 = vunpack.c.l.s4 1983009808
    %v1365 = vunpack.c.0.s8 %v1364
    %v1366 = vlaneseq
    %v1367 = vshrl.u32 %v1366, 7
    %v1368 = vsub.s32 %v1365, %v1367
    %v1369 = vrot.slane %v1362, %v1368
    %v1371 = vunpack.c.l.s4 1983009808
    %v1372 = vunpack.c.0.s8 %v1371
    %v1373 = vlaneseq
    %v1374 = vshrl.u32 %v1373, 7
    %v1375 = vsub.s32 %v1372, %v1374
    %v1376 = vrot.slane %v1354, %v1375
    %v1377 = vcombine.low %v1369, %v1376
    %1379 = vst [vmem:[#allocation10] sm:$0x3f] %v1377
    %v1380 = vpack.c.bf16 %v1233, %v1233
    %v1381 = vpack.c.bf16 %v1235, %v1235
    %v1382 = vpack.c.bf16 %v1354, %v1354
    %v1383 = vld [vmem:[#allocation7] sm:$0xff]
    %v1384 = vld [vmem:[#allocation7 + $0x8] sm:$0xff]
    %v1385 = vld [vmem:[#allocation7 + $0x10] sm:$0xff]
    %v1386 = vld [vmem:[#allocation7 + $0x18] sm:$0xff]
    %v1387 = vld [vmem:[#allocation7 + $0x20] sm:$0xff]
    %v1388 = vld [vmem:[#allocation7 + $0x28] sm:$0xff]
    %v1389 = vld [vmem:[#allocation7 + $0x30] sm:$0xff]
    %v1390 = vld [vmem:[#allocation7 + $0x38] sm:$0xff]
    %v1391 = vld [vmem:[#allocation7 + $0x40] sm:$0xff]
    %v1392 = vld [vmem:[#allocation7 + $0x48] sm:$0xff]
    %v1393 = vld [vmem:[#allocation7 + $0x50] sm:$0xff]
    %v1394 = vld [vmem:[#allocation7 + $0x58] sm:$0xff]
    %v1395 = vld [vmem:[#allocation7 + $0x60] sm:$0xff]
    %v1396 = vld [vmem:[#allocation7 + $0x68] sm:$0xff]
    %v1397 = vld [vmem:[#allocation7 + $0x70] sm:$0xff]
    %v1398 = vld [vmem:[#allocation7 + $0x78] sm:$0xff]
    %v1399 = vld [vmem:[#allocation7 + $0x80] sm:$0xff]
    %v1400 = vld [vmem:[#allocation7 + $0x88] sm:$0xff]
    %v1401 = vld [vmem:[#allocation7 + $0x90] sm:$0xff]
    %v1402 = vld [vmem:[#allocation7 + $0x98] sm:$0xff]
    %v1403 = vld [vmem:[#allocation7 + $0xa0] sm:$0xff]
    %v1404 = vld [vmem:[#allocation7 + $0xa8] sm:$0xff]
    %v1405 = vld [vmem:[#allocation7 + $0xb0] sm:$0xff]
    %v1406 = vld [vmem:[#allocation7 + $0xb8] sm:$0xff]
    %v1407 = vld [vmem:[#allocation7 + $0xc0] sm:$0xff]
    %v1408 = vld [vmem:[#allocation7 + $0xc8] sm:$0xff]
    %v1409 = vld [vmem:[#allocation7 + $0xd0] sm:$0xff]
    %v1410 = vld [vmem:[#allocation7 + $0xd8] sm:$0xff]
    %v1411 = vld [vmem:[#allocation7 + $0xe0] sm:$0xff]
    %v1412 = vld [vmem:[#allocation7 + $0xe8] sm:$0xff]
    %v1413 = vld [vmem:[#allocation7 + $0xf0] sm:$0xff]
    %v1414 = vld [vmem:[#allocation7 + $0xf8] sm:$0xff]
    %v1415 = vld [vmem:[#allocation7 + $0x100] sm:$0xff]
    %v1416 = vld [vmem:[#allocation7 + $0x108] sm:$0xff]
    %v1417 = vld [vmem:[#allocation7 + $0x110] sm:$0xff]
    %v1418 = vld [vmem:[#allocation7 + $0x118] sm:$0xff]
    %v1419 = vld [vmem:[#allocation7 + $0x120] sm:$0xff]
    %v1420 = vld [vmem:[#allocation7 + $0x128] sm:$0xff]
    %v1421 = vld [vmem:[#allocation7 + $0x130] sm:$0xff]
    %v1422 = vld [vmem:[#allocation7 + $0x138] sm:$0xff]
    %v1423 = vld [vmem:[#allocation7 + $0x140] sm:$0xff]
    %v1424 = vld [vmem:[#allocation7 + $0x148] sm:$0xff]
    %v1425 = vld [vmem:[#allocation7 + $0x150] sm:$0xff]
    %v1426 = vld [vmem:[#allocation7 + $0x158] sm:$0xff]
    %v1427 = vld [vmem:[#allocation7 + $0x160] sm:$0xff]
    %v1428 = vld [vmem:[#allocation7 + $0x168] sm:$0xff]
    %v1429 = vld [vmem:[#allocation7 + $0x170] sm:$0xff]
    %v1430 = vld [vmem:[#allocation7 + $0x178] sm:$0xff]
    %v1431 = vld [vmem:[#allocation7 + $0x180] sm:$0xff]
    %v1432 = vld [vmem:[#allocation7 + $0x188] sm:$0xff]
    %v1433 = vld [vmem:[#allocation7 + $0x190] sm:$0xff]
    %v1434 = vld [vmem:[#allocation7 + $0x198] sm:$0xff]
    %v1435 = vld [vmem:[#allocation7 + $0x1a0] sm:$0xff]
    %v1436 = vld [vmem:[#allocation7 + $0x1a8] sm:$0xff]
    %v1437 = vld [vmem:[#allocation7 + $0x1b0] sm:$0xff]
    %v1438 = vld [vmem:[#allocation7 + $0x1b8] sm:$0xff]
    %v1439 = vld [vmem:[#allocation7 + $0x1c0] sm:$0xff]
    %v1440 = vld [vmem:[#allocation7 + $0x1c8] sm:$0xff]
    %v1441 = vld [vmem:[#allocation7 + $0x1d0] sm:$0xff]
    %v1442 = vld [vmem:[#allocation7 + $0x1d8] sm:$0xff]
    %v1443 = vld [vmem:[#allocation7 + $0x1e0] sm:$0xff]
    %v1444 = vld [vmem:[#allocation7 + $0x1e8] sm:$0xff]
    %v1445 = vld [vmem:[#allocation7 + $0x1f0] sm:$0xff]
    %v1446 = vld [vmem:[#allocation7 + $0x1f8] sm:$0xff]
    %v1447 = vld [vmem:[#allocation7 + $0x200] sm:$0xff]
    %v1448 = vld [vmem:[#allocation7 + $0x208] sm:$0xff]
    %v1449 = vld [vmem:[#allocation7 + $0x210] sm:$0xff]
    %v1450 = vld [vmem:[#allocation7 + $0x218] sm:$0xff]
    %v1451 = vld [vmem:[#allocation7 + $0x220] sm:$0xff]
    %v1452 = vld [vmem:[#allocation7 + $0x228] sm:$0xff]
    %v1453 = vld [vmem:[#allocation7 + $0x230] sm:$0xff]
    %v1454 = vld [vmem:[#allocation7 + $0x238] sm:$0xff]
    %v1455 = vld [vmem:[#allocation7 + $0x240] sm:$0xff]
    %v1456 = vld [vmem:[#allocation7 + $0x248] sm:$0xff]
    %v1457 = vld [vmem:[#allocation7 + $0x250] sm:$0xff]
    %v1458 = vld [vmem:[#allocation7 + $0x258] sm:$0xff]
    %v1459 = vld [vmem:[#allocation7 + $0x260] sm:$0xff]
    %v1460 = vld [vmem:[#allocation7 + $0x268] sm:$0xff]
    %v1461 = vld [vmem:[#allocation7 + $0x270] sm:$0xff]
    %v1462 = vld [vmem:[#allocation7 + $0x278] sm:$0xff]
    %v1463 = vld [vmem:[#allocation7 + $0x280] sm:$0xff]
    %v1464 = vld [vmem:[#allocation7 + $0x288] sm:$0xff]
    %v1465 = vld [vmem:[#allocation7 + $0x290] sm:$0xff]
    %v1466 = vld [vmem:[#allocation7 + $0x298] sm:$0xff]
    %v1467 = vld [vmem:[#allocation7 + $0x2a0] sm:$0xff]
    %v1468 = vld [vmem:[#allocation7 + $0x2a8] sm:$0xff]
    %v1469 = vld [vmem:[#allocation7 + $0x2b0] sm:$0xff]
    %v1470 = vld [vmem:[#allocation7 + $0x2b8] sm:$0xff]
    %v1471 = vld [vmem:[#allocation7 + $0x2c0] sm:$0xff]
    %v1472 = vld [vmem:[#allocation7 + $0x2c8] sm:$0xff]
    %v1473 = vld [vmem:[#allocation7 + $0x2d0] sm:$0xff]
    %v1474 = vld [vmem:[#allocation7 + $0x2d8] sm:$0xff]
    %v1475 = vld [vmem:[#allocation7 + $0x2e0] sm:$0xff]
    %v1476 = vld [vmem:[#allocation7 + $0x2e8] sm:$0xff]
    %v1477 = vld [vmem:[#allocation7 + $0x2f0] sm:$0xff]
    %v1478 = vld [vmem:[#allocation7 + $0x2f8] sm:$0xff]
    %v1479 = vld [vmem:[#allocation7 + $0x300] sm:$0xff]
    %v1480 = vld [vmem:[#allocation7 + $0x308] sm:$0xff]
    %v1481 = vld [vmem:[#allocation7 + $0x310] sm:$0xff]
    %v1482 = vld [vmem:[#allocation7 + $0x318] sm:$0xff]
    %v1483 = vld [vmem:[#allocation7 + $0x320] sm:$0xff]
    %v1484 = vld [vmem:[#allocation7 + $0x328] sm:$0xff]
    %v1485 = vld [vmem:[#allocation7 + $0x330] sm:$0xff]
    %v1486 = vld [vmem:[#allocation7 + $0x338] sm:$0xff]
    %v1487 = vld [vmem:[#allocation7 + $0x340] sm:$0xff]
    %v1488 = vld [vmem:[#allocation7 + $0x348] sm:$0xff]
    %v1489 = vld [vmem:[#allocation7 + $0x350] sm:$0xff]
    %v1490 = vld [vmem:[#allocation7 + $0x358] sm:$0xff]
    %v1491 = vld [vmem:[#allocation7 + $0x360] sm:$0xff]
    %v1492 = vld [vmem:[#allocation7 + $0x368] sm:$0xff]
    %v1493 = vld [vmem:[#allocation7 + $0x370] sm:$0xff]
    %v1494 = vld [vmem:[#allocation7 + $0x378] sm:$0xff]
    %v1495 = vld [vmem:[#allocation7 + $0x380] sm:$0xff]
    %v1496 = vld [vmem:[#allocation7 + $0x388] sm:$0xff]
    %v1497 = vld [vmem:[#allocation7 + $0x390] sm:$0xff]
    %v1498 = vld [vmem:[#allocation7 + $0x398] sm:$0xff]
    %v1499 = vld [vmem:[#allocation7 + $0x3a0] sm:$0xff]
    %v1500 = vld [vmem:[#allocation7 + $0x3a8] sm:$0xff]
    %v1501 = vld [vmem:[#allocation7 + $0x3b0] sm:$0xff]
    %v1502 = vld [vmem:[#allocation7 + $0x3b8] sm:$0xff]
    %v1503 = vld [vmem:[#allocation7 + $0x3c0] sm:$0xff]
    %v1504 = vld [vmem:[#allocation7 + $0x3c8] sm:$0xff]
    %v1505 = vld [vmem:[#allocation7 + $0x3d0] sm:$0xff]
    %v1506 = vld [vmem:[#allocation7 + $0x3d8] sm:$0xff]
    %v1507 = vld [vmem:[#allocation7 + $0x3e0] sm:$0xff]
    %v1508 = vld [vmem:[#allocation7 + $0x3e8] sm:$0xff]
    %v1509 = vld [vmem:[#allocation7 + $0x3f0] sm:$0xff]
    %v1510 = vld [vmem:[#allocation7 + $0x3f8] sm:$0xff]
    %v1511 = vld [vmem:[#allocation7 + $0x400] sm:$0xff]
    %v1512 = vld [vmem:[#allocation7 + $0x408] sm:$0xff]
    %v1513 = vld [vmem:[#allocation7 + $0x410] sm:$0xff]
    %v1514 = vld [vmem:[#allocation7 + $0x418] sm:$0xff]
    %v1515 = vld [vmem:[#allocation7 + $0x420] sm:$0xff]
    %v1516 = vld [vmem:[#allocation7 + $0x428] sm:$0xff]
    %v1517 = vld [vmem:[#allocation7 + $0x430] sm:$0xff]
    %v1518 = vld [vmem:[#allocation7 + $0x438] sm:$0xff]
    %v1519 = vld [vmem:[#allocation7 + $0x440] sm:$0xff]
    %v1520 = vld [vmem:[#allocation7 + $0x448] sm:$0xff]
    %v1521 = vld [vmem:[#allocation7 + $0x450] sm:$0xff]
    %v1522 = vld [vmem:[#allocation7 + $0x458] sm:$0xff]
    %v1523 = vld [vmem:[#allocation7 + $0x460] sm:$0xff]
    %v1524 = vld [vmem:[#allocation7 + $0x468] sm:$0xff]
    %v1525 = vld [vmem:[#allocation7 + $0x470] sm:$0xff]
    %v1526 = vld [vmem:[#allocation7 + $0x478] sm:$0xff]
    %v1527 = vld [vmem:[%s1] sm:$0x1]
    %v1528 = vld [vmem:[#allocation8] sm:$0xff]
    %v1529 = vld [vmem:[#allocation8 + $0x8] sm:$0xff]
    %v1530 = vld [vmem:[#allocation8 + $0x10] sm:$0xff]
    %v1531 = vld [vmem:[#allocation8 + $0x18] sm:$0xff]
    %v1532 = vld [vmem:[#allocation8 + $0x20] sm:$0xff]
    %v1533 = vld [vmem:[#allocation8 + $0x28] sm:$0xff]
    %v1534 = vld [vmem:[#allocation8 + $0x30] sm:$0xff]
    %v1535 = vld [vmem:[#allocation8 + $0x38] sm:$0xff]
    %v1536 = vld [vmem:[#allocation8 + $0x40] sm:$0xff]
    %v1537 = vld [vmem:[#allocation8 + $0x48] sm:$0x11]
    %v1538 = vld [vmem:[#allocation8 + $0x50] sm:$0x11]
    %v1539 = vld [vmem:[#allocation8 + $0x58] sm:$0x11]
    %v1552 = vunpack.c.l.b16 %v1528
    %v1553 = vunpack.c.h.b16 %v1528
    %v1554 = vunpack.c.l.b16 %v1529
    %v1555 = vunpack.c.h.b16 %v1529
    %v1556 = vunpack.c.l.b16 %v1530
    %v1557 = vunpack.c.h.b16 %v1530
    %v1558 = vunpack.c.l.b16 %v1531
    %v1559 = vunpack.c.h.b16 %v1531
    %v1560 = vunpack.c.l.b16 %v1532
    %v1561 = vunpack.c.h.b16 %v1532
    %v1562 = vunpack.c.l.b16 %v1533
    %v1563 = vunpack.c.h.b16 %v1533
    %v1564 = vunpack.c.l.b16 %v1534
    %v1565 = vunpack.c.h.b16 %v1534
    %v1566 = vunpack.c.l.b16 %v1535
    %v1567 = vunpack.c.h.b16 %v1535
    %v1568 = vunpack.c.l.b16 %v1536
    %v1569 = vunpack.c.h.b16 %v1536
    %v1570 = vunpack.c.l.b16 %v1537
    %v1571 = vunpack.c.h.b16 %v1537
    %v1572 = vunpack.c.l.b16 %v1538
    %v1573 = vunpack.c.h.b16 %v1538
    %v1574 = vunpack.c.l.b16 %v1539
    %v1575 = vunpack.c.h.b16 %v1539
    %v1576 = vpack.c.b16 %v1558, %v1552
    %v1577 = vpack.c.b16 %v1559, %v1553
    %v1578 = vpack.c.b16 %v1560, %v1554
    %v1579 = vpack.c.b16 %v1561, %v1555
    %v1580 = vpack.c.b16 %v1562, %v1556
    %v1581 = vpack.c.b16 %v1563, %v1557
    %v1582 = vpack.c.b16 %v1570, %v1564
    %v1583 = vpack.c.b16 %v1571, %v1565
    %v1584 = vpack.c.b16 %v1572, %v1566
    %v1585 = vpack.c.b16 %v1573, %v1567
    %v1586 = vpack.c.b16 %v1574, %v1568
    %v1587 = vpack.c.b16 %v1575, %v1569
    %vm1594 = vcmask 203776
    %v1596 = vsel %vm1594, %v1527, 0
    %vm1598 = vcmask 1043456
    %vm1599 = vcmask 1044480
    %v1600 = vsel %vm1598, 4294967295, 65535
    %v1601 = vsel %vm1599, %v1600, 0
    %v1603 = vand.u32 %v1582, %v1601
    %v1606 = vand.u32 %v1583, %v1601
    %v1609 = vand.u32 %v1584, %v1601
    %v1612 = vand.u32 %v1585, %v1601
    %v1615 = vand.u32 %v1586, %v1601
    %v1618 = vand.u32 %v1587, %v1601
    %1620 = vmatprep.subr.bf16.mxu0 %v1577
    %1621 = vmatpush1.bf16.msra.mxu0 %v1576
    %1622 = vmatprep.subr.bf16.mxu0 %v1606
    %1623 = vmatpush1.bf16.msra.mxu0 %v1603
    %1624 = vmatprep.subr.bf16.mxu0 0
    %1625 = vmatpush1.bf16.msra.mxu0 0
    %1626 = vmatprep.subr.bf16.mxu0 0
    %1627 = vmatpush1.bf16.msra.mxu0 0
    %1628 = vmatprep.subr.bf16.mxu0 0
    %1629 = vmatpush1.bf16.msra.mxu0 0
    %1630 = vmatprep.subr.bf16.mxu0 0
    %1631 = vmatpush1.bf16.msra.mxu0 0
    %1632 = vmatprep.subr.bf16.mxu0 0
    %1633 = vmatpush1.bf16.msra.mxu0 0
    %1634 = vmatprep.subr.bf16.mxu0 0
    %1635 = vmatpush1.bf16.msra.mxu0 0
    %1636 = vmatprep.subr.bf16.mxu0 0
    %1637 = vmatpush1.bf16.msra.mxu0 0
    %1638 = vmatprep.subr.bf16.mxu0 0
    %1639 = vmatpush1.bf16.msra.mxu0 0
    %1640 = vmatprep.subr.bf16.mxu0 0
    %1641 = vmatpush1.bf16.msra.mxu0 0
    %1642 = vmatprep.subr.bf16.mxu0 0
    %1643 = vmatpush1.bf16.msra.mxu0 0
    %1644 = vmatprep.subr.bf16.mxu0 0
    %1645 = vmatpush1.bf16.msra.mxu0 0
    %1646 = vmatprep.subr.bf16.mxu0 0
    %1647 = vmatpush1.bf16.msra.mxu0 0
    %1648 = vmatprep.subr.bf16.mxu0 0
    %1649 = vmatpush1.bf16.msra.mxu0 0
    %1650 = vmatprep.subr.bf16.mxu0 0
    %1651 = vmatpush1.bf16.msra.mxu0 0
    %1652 = vmatprep.mubr.bf16.mxu0 0
    %1653 = vmatmul.mubr.bf16.gmra.mrb[0].mxu0 %v1596
    %v1654 = vpop.f32.mrb[0].mxu0
    %v1655 = vadd.f32 0.0, %v1654
    %v1656 = vpop.f32.mrb[0].mxu0
    %v1657 = vadd.f32 0.0, %v1656
    %v1658 = vpop.f32.mrb[0].mxu0
    %v1659 = vpop.f32.mrb[0].mxu0
    %1660 = vdwg.mxu0
    %1661 = vmatprep.subr.bf16.mxu0 %v1579
    %1662 = vmatpush1.bf16.msra.mxu0 %v1578
    %1663 = vmatprep.subr.bf16.mxu0 %v1612
    %1664 = vmatpush1.bf16.msra.mxu0 %v1609
    %1665 = vmatprep.subr.bf16.mxu0 0
    %1666 = vmatpush1.bf16.msra.mxu0 0
    %1667 = vmatprep.subr.bf16.mxu0 0
    %1668 = vmatpush1.bf16.msra.mxu0 0
    %1669 = vmatprep.subr.bf16.mxu0 0
    %1670 = vmatpush1.bf16.msra.mxu0 0
    %1671 = vmatprep.subr.bf16.mxu0 0
    %1672 = vmatpush1.bf16.msra.mxu0 0
    %1673 = vmatprep.subr.bf16.mxu0 0
    %1674 = vmatpush1.bf16.msra.mxu0 0
    %1675 = vmatprep.subr.bf16.mxu0 0
    %1676 = vmatpush1.bf16.msra.mxu0 0
    %1677 = vmatprep.subr.bf16.mxu0 0
    %1678 = vmatpush1.bf16.msra.mxu0 0
    %1679 = vmatprep.subr.bf16.mxu0 0
    %1680 = vmatpush1.bf16.msra.mxu0 0
    %1681 = vmatprep.subr.bf16.mxu0 0
    %1682 = vmatpush1.bf16.msra.mxu0 0
    %1683 = vmatprep.subr.bf16.mxu0 0
    %1684 = vmatpush1.bf16.msra.mxu0 0
    %1685 = vmatprep.subr.bf16.mxu0 0
    %1686 = vmatpush1.bf16.msra.mxu0 0
    %1687 = vmatprep.subr.bf16.mxu0 0
    %1688 = vmatpush1.bf16.msra.mxu0 0
    %1689 = vmatprep.subr.bf16.mxu0 0
    %1690 = vmatpush1.bf16.msra.mxu0 0
    %1691 = vmatprep.subr.bf16.mxu0 0
    %1692 = vmatpush1.bf16.msra.mxu0 0
    %1693 = vmatprep.mubr.bf16.mxu0 0
    %1694 = vmatmul.mubr.bf16.gmra.mrb[0].mxu0 %v1596
    %v1695 = vpop.f32.mrb[0].mxu0
    %v1696 = vadd.f32 0.0, %v1695
    %v1697 = vpop.f32.mrb[0].mxu0
    %v1698 = vadd.f32 0.0, %v1697
    %v1699 = vpop.f32.mrb[0].mxu0
    %v1700 = vpop.f32.mrb[0].mxu0
    %1701 = vdwg.mxu0
    %1702 = vmatprep.subr.bf16.mxu0 %v1581
    %1703 = vmatpush1.bf16.msra.mxu0 %v1580
    %1704 = vmatprep.subr.bf16.mxu0 %v1618
    %1705 = vmatpush1.bf16.msra.mxu0 %v1615
    %1706 = vmatprep.subr.bf16.mxu0 0
    %1707 = vmatpush1.bf16.msra.mxu0 0
    %1708 = vmatprep.subr.bf16.mxu0 0
    %1709 = vmatpush1.bf16.msra.mxu0 0
    %1710 = vmatprep.subr.bf16.mxu0 0
    %1711 = vmatpush1.bf16.msra.mxu0 0
    %1712 = vmatprep.subr.bf16.mxu0 0
    %1713 = vmatpush1.bf16.msra.mxu0 0
    %1714 = vmatprep.subr.bf16.mxu0 0
    %1715 = vmatpush1.bf16.msra.mxu0 0
    %1716 = vmatprep.subr.bf16.mxu0 0
    %1717 = vmatpush1.bf16.msra.mxu0 0
    %1718 = vmatprep.subr.bf16.mxu0 0
    %1719 = vmatpush1.bf16.msra.mxu0 0
    %1720 = vmatprep.subr.bf16.mxu0 0
    %1721 = vmatpush1.bf16.msra.mxu0 0
    %1722 = vmatprep.subr.bf16.mxu0 0
    %1723 = vmatpush1.bf16.msra.mxu0 0
    %1724 = vmatprep.subr.bf16.mxu0 0
    %1725 = vmatpush1.bf16.msra.mxu0 0
    %1726 = vmatprep.subr.bf16.mxu0 0
    %1727 = vmatpush1.bf16.msra.mxu0 0
    %1728 = vmatprep.subr.bf16.mxu0 0
    %1729 = vmatpush1.bf16.msra.mxu0 0
    %1730 = vmatprep.subr.bf16.mxu0 0
    %1731 = vmatpush1.bf16.msra.mxu0 0
    %1732 = vmatprep.subr.bf16.mxu0 0
    %1733 = vmatpush1.bf16.msra.mxu0 0
    %1734 = vmatprep.mubr.bf16.mxu0 0
    %1735 = vmatmul.mubr.bf16.gmra.mrb[0].mxu0 %v1596
    %v1736 = vpop.f32.mrb[0].mxu0
    %v1737 = vadd.f32 0.0, %v1736
    %v1738 = vpop.f32.mrb[0].mxu0
    %v1739 = vadd.f32 0.0, %v1738
    %v1740 = vpop.f32.mrb[0].mxu0
    %v1741 = vpop.f32.mrb[0].mxu0
    %1742 = vdwg.mxu0
    %v1887 = vunpack.c.l.b16 %v1383
    %v1888 = vunpack.c.h.b16 %v1383
    %v1889 = vunpack.c.l.b16 %v1384
    %v1890 = vunpack.c.h.b16 %v1384
    %v1891 = vunpack.c.l.b16 %v1385
    %v1892 = vunpack.c.h.b16 %v1385
    %v1893 = vunpack.c.l.b16 %v1386
    %v1894 = vunpack.c.h.b16 %v1386
    %v1895 = vunpack.c.l.b16 %v1387
    %v1896 = vunpack.c.h.b16 %v1387
    %v1897 = vunpack.c.l.b16 %v1388
    %v1898 = vunpack.c.h.b16 %v1388
    %v1899 = vunpack.c.l.b16 %v1389
    %v1900 = vunpack.c.h.b16 %v1389
    %v1901 = vunpack.c.l.b16 %v1390
    %v1902 = vunpack.c.h.b16 %v1390
    %v1903 = vunpack.c.l.b16 %v1391
    %v1904 = vunpack.c.h.b16 %v1391
    %v1905 = vunpack.c.l.b16 %v1392
    %v1906 = vunpack.c.h.b16 %v1392
    %v1907 = vunpack.c.l.b16 %v1393
    %v1908 = vunpack.c.h.b16 %v1393
    %v1909 = vunpack.c.l.b16 %v1394
    %v1910 = vunpack.c.h.b16 %v1394
    %v1911 = vunpack.c.l.b16 %v1395
    %v1912 = vunpack.c.h.b16 %v1395
    %v1913 = vunpack.c.l.b16 %v1396
    %v1914 = vunpack.c.h.b16 %v1396
    %v1915 = vunpack.c.l.b16 %v1397
    %v1916 = vunpack.c.h.b16 %v1397
    %v1917 = vunpack.c.l.b16 %v1398
    %v1918 = vunpack.c.h.b16 %v1398
    %v1919 = vunpack.c.l.b16 %v1399
    %v1920 = vunpack.c.h.b16 %v1399
    %v1921 = vunpack.c.l.b16 %v1400
    %v1922 = vunpack.c.h.b16 %v1400
    %v1923 = vunpack.c.l.b16 %v1401
    %v1924 = vunpack.c.h.b16 %v1401
    %v1925 = vunpack.c.l.b16 %v1402
    %v1926 = vunpack.c.h.b16 %v1402
    %v1927 = vunpack.c.l.b16 %v1403
    %v1928 = vunpack.c.h.b16 %v1403
    %v1929 = vunpack.c.l.b16 %v1404
    %v1930 = vunpack.c.h.b16 %v1404
    %v1931 = vunpack.c.l.b16 %v1405
    %v1932 = vunpack.c.h.b16 %v1405
    %v1933 = vunpack.c.l.b16 %v1406
    %v1934 = vunpack.c.h.b16 %v1406
    %v1935 = vunpack.c.l.b16 %v1407
    %v1936 = vunpack.c.h.b16 %v1407
    %v1937 = vunpack.c.l.b16 %v1408
    %v1938 = vunpack.c.h.b16 %v1408
    %v1939 = vunpack.c.l.b16 %v1409
    %v1940 = vunpack.c.h.b16 %v1409
    %v1941 = vunpack.c.l.b16 %v1410
    %v1942 = vunpack.c.h.b16 %v1410
    %v1943 = vunpack.c.l.b16 %v1411
    %v1944 = vunpack.c.h.b16 %v1411
    %v1945 = vunpack.c.l.b16 %v1412
    %v1946 = vunpack.c.h.b16 %v1412
    %v1947 = vunpack.c.l.b16 %v1413
    %v1948 = vunpack.c.h.b16 %v1413
    %v1949 = vunpack.c.l.b16 %v1414
    %v1950 = vunpack.c.h.b16 %v1414
    %v1951 = vunpack.c.l.b16 %v1415
    %v1952 = vunpack.c.h.b16 %v1415
    %v1953 = vunpack.c.l.b16 %v1416
    %v1954 = vunpack.c.h.b16 %v1416
    %v1955 = vunpack.c.l.b16 %v1417
    %v1956 = vunpack.c.h.b16 %v1417
    %v1957 = vunpack.c.l.b16 %v1418
    %v1958 = vunpack.c.h.b16 %v1418
    %v1959 = vunpack.c.l.b16 %v1419
    %v1960 = vunpack.c.h.b16 %v1419
    %v1961 = vunpack.c.l.b16 %v1420
    %v1962 = vunpack.c.h.b16 %v1420
    %v1963 = vunpack.c.l.b16 %v1421
    %v1964 = vunpack.c.h.b16 %v1421
    %v1965 = vunpack.c.l.b16 %v1422
    %v1966 = vunpack.c.h.b16 %v1422
    %v1967 = vunpack.c.l.b16 %v1423
    %v1968 = vunpack.c.h.b16 %v1423
    %v1969 = vunpack.c.l.b16 %v1424
    %v1970 = vunpack.c.h.b16 %v1424
    %v1971 = vunpack.c.l.b16 %v1425
    %v1972 = vunpack.c.h.b16 %v1425
    %v1973 = vunpack.c.l.b16 %v1426
    %v1974 = vunpack.c.h.b16 %v1426
    %v1975 = vunpack.c.l.b16 %v1427
    %v1976 = vunpack.c.h.b16 %v1427
    %v1977 = vunpack.c.l.b16 %v1428
    %v1978 = vunpack.c.h.b16 %v1428
    %v1979 = vunpack.c.l.b16 %v1429
    %v1980 = vunpack.c.h.b16 %v1429
    %v1981 = vunpack.c.l.b16 %v1430
    %v1982 = vunpack.c.h.b16 %v1430
    %v1983 = vunpack.c.l.b16 %v1431
    %v1984 = vunpack.c.h.b16 %v1431
    %v1985 = vunpack.c.l.b16 %v1432
    %v1986 = vunpack.c.h.b16 %v1432
    %v1987 = vunpack.c.l.b16 %v1433
    %v1988 = vunpack.c.h.b16 %v1433
    %v1989 = vunpack.c.l.b16 %v1434
    %v1990 = vunpack.c.h.b16 %v1434
    %v1991 = vunpack.c.l.b16 %v1435
    %v1992 = vunpack.c.h.b16 %v1435
    %v1993 = vunpack.c.l.b16 %v1436
    %v1994 = vunpack.c.h.b16 %v1436
    %v1995 = vunpack.c.l.b16 %v1437
    %v1996 = vunpack.c.h.b16 %v1437
    %v1997 = vunpack.c.l.b16 %v1438
    %v1998 = vunpack.c.h.b16 %v1438
    %v1999 = vunpack.c.l.b16 %v1439
    %v2000 = vunpack.c.h.b16 %v1439
    %v2001 = vunpack.c.l.b16 %v1440
    %v2002 = vunpack.c.h.b16 %v1440
    %v2003 = vunpack.c.l.b16 %v1441
    %v2004 = vunpack.c.h.b16 %v1441
    %v2005 = vunpack.c.l.b16 %v1442
    %v2006 = vunpack.c.h.b16 %v1442
    %v2007 = vunpack.c.l.b16 %v1443
    %v2008 = vunpack.c.h.b16 %v1443
    %v2009 = vunpack.c.l.b16 %v1444
    %v2010 = vunpack.c.h.b16 %v1444
    %v2011 = vunpack.c.l.b16 %v1445
    %v2012 = vunpack.c.h.b16 %v1445
    %v2013 = vunpack.c.l.b16 %v1446
    %v2014 = vunpack.c.h.b16 %v1446
    %v2015 = vunpack.c.l.b16 %v1447
    %v2016 = vunpack.c.h.b16 %v1447
    %v2017 = vunpack.c.l.b16 %v1448
    %v2018 = vunpack.c.h.b16 %v1448
    %v2019 = vunpack.c.l.b16 %v1449
    %v2020 = vunpack.c.h.b16 %v1449
    %v2021 = vunpack.c.l.b16 %v1450
    %v2022 = vunpack.c.h.b16 %v1450
    %v2023 = vunpack.c.l.b16 %v1451
    %v2024 = vunpack.c.h.b16 %v1451
    %v2025 = vunpack.c.l.b16 %v1452
    %v2026 = vunpack.c.h.b16 %v1452
    %v2027 = vunpack.c.l.b16 %v1453
    %v2028 = vunpack.c.h.b16 %v1453
    %v2029 = vunpack.c.l.b16 %v1454
    %v2030 = vunpack.c.h.b16 %v1454
    %v2031 = vunpack.c.l.b16 %v1455
    %v2032 = vunpack.c.h.b16 %v1455
    %v2033 = vunpack.c.l.b16 %v1456
    %v2034 = vunpack.c.h.b16 %v1456
    %v2035 = vunpack.c.l.b16 %v1457
    %v2036 = vunpack.c.h.b16 %v1457
    %v2037 = vunpack.c.l.b16 %v1458
    %v2038 = vunpack.c.h.b16 %v1458
    %v2039 = vunpack.c.l.b16 %v1459
    %v2040 = vunpack.c.h.b16 %v1459
    %v2041 = vunpack.c.l.b16 %v1460
    %v2042 = vunpack.c.h.b16 %v1460
    %v2043 = vunpack.c.l.b16 %v1461
    %v2044 = vunpack.c.h.b16 %v1461
    %v2045 = vunpack.c.l.b16 %v1462
    %v2046 = vunpack.c.h.b16 %v1462
    %v2047 = vunpack.c.l.b16 %v1463
    %v2048 = vunpack.c.h.b16 %v1463
    %v2049 = vunpack.c.l.b16 %v1464
    %v2050 = vunpack.c.h.b16 %v1464
    %v2051 = vunpack.c.l.b16 %v1465
    %v2052 = vunpack.c.h.b16 %v1465
    %v2053 = vunpack.c.l.b16 %v1466
    %v2054 = vunpack.c.h.b16 %v1466
    %v2055 = vunpack.c.l.b16 %v1467
    %v2056 = vunpack.c.h.b16 %v1467
    %v2057 = vunpack.c.l.b16 %v1468
    %v2058 = vunpack.c.h.b16 %v1468
    %v2059 = vunpack.c.l.b16 %v1469
    %v2060 = vunpack.c.h.b16 %v1469
    %v2061 = vunpack.c.l.b16 %v1470
    %v2062 = vunpack.c.h.b16 %v1470
    %v2063 = vunpack.c.l.b16 %v1471
    %v2064 = vunpack.c.h.b16 %v1471
    %v2065 = vunpack.c.l.b16 %v1472
    %v2066 = vunpack.c.h.b16 %v1472
    %v2067 = vunpack.c.l.b16 %v1473
    %v2068 = vunpack.c.h.b16 %v1473
    %v2069 = vunpack.c.l.b16 %v1474
    %v2070 = vunpack.c.h.b16 %v1474
    %v2071 = vunpack.c.l.b16 %v1475
    %v2072 = vunpack.c.h.b16 %v1475
    %v2073 = vunpack.c.l.b16 %v1476
    %v2074 = vunpack.c.h.b16 %v1476
    %v2075 = vunpack.c.l.b16 %v1477
    %v2076 = vunpack.c.h.b16 %v1477
    %v2077 = vunpack.c.l.b16 %v1478
    %v2078 = vunpack.c.h.b16 %v1478
    %v2079 = vunpack.c.l.b16 %v1479
    %v2080 = vunpack.c.h.b16 %v1479
    %v2081 = vunpack.c.l.b16 %v1480
    %v2082 = vunpack.c.h.b16 %v1480
    %v2083 = vunpack.c.l.b16 %v1481
    %v2084 = vunpack.c.h.b16 %v1481
    %v2085 = vunpack.c.l.b16 %v1482
    %v2086 = vunpack.c.h.b16 %v1482
    %v2087 = vunpack.c.l.b16 %v1483
    %v2088 = vunpack.c.h.b16 %v1483
    %v2089 = vunpack.c.l.b16 %v1484
    %v2090 = vunpack.c.h.b16 %v1484
    %v2091 = vunpack.c.l.b16 %v1485
    %v2092 = vunpack.c.h.b16 %v1485
    %v2093 = vunpack.c.l.b16 %v1486
    %v2094 = vunpack.c.h.b16 %v1486
    %v2095 = vunpack.c.l.b16 %v1487
    %v2096 = vunpack.c.h.b16 %v1487
    %v2097 = vunpack.c.l.b16 %v1488
    %v2098 = vunpack.c.h.b16 %v1488
    %v2099 = vunpack.c.l.b16 %v1489
    %v2100 = vunpack.c.h.b16 %v1489
    %v2101 = vunpack.c.l.b16 %v1490
    %v2102 = vunpack.c.h.b16 %v1490
    %v2103 = vunpack.c.l.b16 %v1491
    %v2104 = vunpack.c.h.b16 %v1491
    %v2105 = vunpack.c.l.b16 %v1492
    %v2106 = vunpack.c.h.b16 %v1492
    %v2107 = vunpack.c.l.b16 %v1493
    %v2108 = vunpack.c.h.b16 %v1493
    %v2109 = vunpack.c.l.b16 %v1494
    %v2110 = vunpack.c.h.b16 %v1494
    %v2111 = vunpack.c.l.b16 %v1495
    %v2112 = vunpack.c.h.b16 %v1495
    %v2113 = vunpack.c.l.b16 %v1496
    %v2114 = vunpack.c.h.b16 %v1496
    %v2115 = vunpack.c.l.b16 %v1497
    %v2116 = vunpack.c.h.b16 %v1497
    %v2117 = vunpack.c.l.b16 %v1498
    %v2118 = vunpack.c.h.b16 %v1498
    %v2119 = vunpack.c.l.b16 %v1499
    %v2120 = vunpack.c.h.b16 %v1499
    %v2121 = vunpack.c.l.b16 %v1500
    %v2122 = vunpack.c.h.b16 %v1500
    %v2123 = vunpack.c.l.b16 %v1501
    %v2124 = vunpack.c.h.b16 %v1501
    %v2125 = vunpack.c.l.b16 %v1502
    %v2126 = vunpack.c.h.b16 %v1502
    %v2127 = vunpack.c.l.b16 %v1503
    %v2128 = vunpack.c.h.b16 %v1503
    %v2129 = vunpack.c.l.b16 %v1504
    %v2130 = vunpack.c.h.b16 %v1504
    %v2131 = vunpack.c.l.b16 %v1505
    %v2132 = vunpack.c.h.b16 %v1505
    %v2133 = vunpack.c.l.b16 %v1506
    %v2134 = vunpack.c.h.b16 %v1506
    %v2135 = vunpack.c.l.b16 %v1507
    %v2136 = vunpack.c.h.b16 %v1507
    %v2137 = vunpack.c.l.b16 %v1508
    %v2138 = vunpack.c.h.b16 %v1508
    %v2139 = vunpack.c.l.b16 %v1509
    %v2140 = vunpack.c.h.b16 %v1509
    %v2141 = vunpack.c.l.b16 %v1510
    %v2142 = vunpack.c.h.b16 %v1510
    %v2143 = vunpack.c.l.b16 %v1511
    %v2144 = vunpack.c.h.b16 %v1511
    %v2145 = vunpack.c.l.b16 %v1512
    %v2146 = vunpack.c.h.b16 %v1512
    %v2147 = vunpack.c.l.b16 %v1513
    %v2148 = vunpack.c.h.b16 %v1513
    %v2149 = vunpack.c.l.b16 %v1514
    %v2150 = vunpack.c.h.b16 %v1514
    %v2151 = vunpack.c.l.b16 %v1515
    %v2152 = vunpack.c.h.b16 %v1515
    %v2153 = vunpack.c.l.b16 %v1516
    %v2154 = vunpack.c.h.b16 %v1516
    %v2155 = vunpack.c.l.b16 %v1517
    %v2156 = vunpack.c.h.b16 %v1517
    %v2157 = vunpack.c.l.b16 %v1518
    %v2158 = vunpack.c.h.b16 %v1518
    %v2159 = vunpack.c.l.b16 %v1519
    %v2160 = vunpack.c.h.b16 %v1519
    %v2161 = vunpack.c.l.b16 %v1520
    %v2162 = vunpack.c.h.b16 %v1520
    %v2163 = vunpack.c.l.b16 %v1521
    %v2164 = vunpack.c.h.b16 %v1521
    %v2165 = vunpack.c.l.b16 %v1522
    %v2166 = vunpack.c.h.b16 %v1522
    %v2167 = vunpack.c.l.b16 %v1523
    %v2168 = vunpack.c.h.b16 %v1523
    %v2169 = vunpack.c.l.b16 %v1524
    %v2170 = vunpack.c.h.b16 %v1524
    %v2171 = vunpack.c.l.b16 %v1525
    %v2172 = vunpack.c.h.b16 %v1525
    %v2173 = vunpack.c.l.b16 %v1526
    %v2174 = vunpack.c.h.b16 %v1526
    %v2175 = vpack.c.b16 %v1893, %v1887
    %v2176 = vpack.c.b16 %v1894, %v1888
    %v2177 = vpack.c.b16 %v1895, %v1889
    %v2178 = vpack.c.b16 %v1896, %v1890
    %v2179 = vpack.c.b16 %v1897, %v1891
    %v2180 = vpack.c.b16 %v1898, %v1892
    %v2181 = vpack.c.b16 %v1905, %v1899
    %v2182 = vpack.c.b16 %v1906, %v1900
    %v2183 = vpack.c.b16 %v1907, %v1901
    %v2184 = vpack.c.b16 %v1908, %v1902
    %v2185 = vpack.c.b16 %v1909, %v1903
    %v2186 = vpack.c.b16 %v1910, %v1904
    %v2187 = vpack.c.b16 %v1917, %v1911
    %v2188 = vpack.c.b16 %v1918, %v1912
    %v2189 = vpack.c.b16 %v1919, %v1913
    %v2190 = vpack.c.b16 %v1920, %v1914
    %v2191 = vpack.c.b16 %v1921, %v1915
    %v2192 = vpack.c.b16 %v1922, %v1916
    %v2193 = vpack.c.b16 %v1929, %v1923
    %v2194 = vpack.c.b16 %v1930, %v1924
    %v2195 = vpack.c.b16 %v1931, %v1925
    %v2196 = vpack.c.b16 %v1932, %v1926
    %v2197 = vpack.c.b16 %v1933, %v1927
    %v2198 = vpack.c.b16 %v1934, %v1928
    %v2199 = vpack.c.b16 %v1941, %v1935
    %v2200 = vpack.c.b16 %v1942, %v1936
    %v2201 = vpack.c.b16 %v1943, %v1937
    %v2202 = vpack.c.b16 %v1944, %v1938
    %v2203 = vpack.c.b16 %v1945, %v1939
    %v2204 = vpack.c.b16 %v1946, %v1940
    %v2205 = vpack.c.b16 %v1953, %v1947
    %v2206 = vpack.c.b16 %v1954, %v1948
    %v2207 = vpack.c.b16 %v1955, %v1949
    %v2208 = vpack.c.b16 %v1956, %v1950
    %v2209 = vpack.c.b16 %v1957, %v1951
    %v2210 = vpack.c.b16 %v1958, %v1952
    %v2211 = vpack.c.b16 %v1965, %v1959
    %v2212 = vpack.c.b16 %v1966, %v1960
    %v2213 = vpack.c.b16 %v1967, %v1961
    %v2214 = vpack.c.b16 %v1968, %v1962
    %v2215 = vpack.c.b16 %v1969, %v1963
    %v2216 = vpack.c.b16 %v1970, %v1964
    %v2217 = vpack.c.b16 %v1977, %v1971
    %v2218 = vpack.c.b16 %v1978, %v1972
    %v2219 = vpack.c.b16 %v1979, %v1973
    %v2220 = vpack.c.b16 %v1980, %v1974
    %v2221 = vpack.c.b16 %v1981, %v1975
    %v2222 = vpack.c.b16 %v1982, %v1976
    %v2223 = vpack.c.b16 %v1989, %v1983
    %v2224 = vpack.c.b16 %v1990, %v1984
    %v2225 = vpack.c.b16 %v1991, %v1985
    %v2226 = vpack.c.b16 %v1992, %v1986
    %v2227 = vpack.c.b16 %v1993, %v1987
    %v2228 = vpack.c.b16 %v1994, %v1988
    %v2229 = vpack.c.b16 %v2001, %v1995
    %v2230 = vpack.c.b16 %v2002, %v1996
    %v2231 = vpack.c.b16 %v2003, %v1997
    %v2232 = vpack.c.b16 %v2004, %v1998
    %v2233 = vpack.c.b16 %v2005, %v1999
    %v2234 = vpack.c.b16 %v2006, %v2000
    %v2235 = vpack.c.b16 %v2013, %v2007
    %v2236 = vpack.c.b16 %v2014, %v2008
    %v2237 = vpack.c.b16 %v2015, %v2009
    %v2238 = vpack.c.b16 %v2016, %v2010
    %v2239 = vpack.c.b16 %v2017, %v2011
    %v2240 = vpack.c.b16 %v2018, %v2012
    %v2241 = vpack.c.b16 %v2025, %v2019
    %v2242 = vpack.c.b16 %v2026, %v2020
    %v2243 = vpack.c.b16 %v2027, %v2021
    %v2244 = vpack.c.b16 %v2028, %v2022
    %v2245 = vpack.c.b16 %v2029, %v2023
    %v2246 = vpack.c.b16 %v2030, %v2024
    %v2247 = vpack.c.b16 %v2037, %v2031
    %v2248 = vpack.c.b16 %v2038, %v2032
    %v2249 = vpack.c.b16 %v2039, %v2033
    %v2250 = vpack.c.b16 %v2040, %v2034
    %v2251 = vpack.c.b16 %v2041, %v2035
    %v2252 = vpack.c.b16 %v2042, %v2036
    %v2253 = vpack.c.b16 %v2049, %v2043
    %v2254 = vpack.c.b16 %v2050, %v2044
    %v2255 = vpack.c.b16 %v2051, %v2045
    %v2256 = vpack.c.b16 %v2052, %v2046
    %v2257 = vpack.c.b16 %v2053, %v2047
    %v2258 = vpack.c.b16 %v2054, %v2048
    %v2259 = vpack.c.b16 %v2061, %v2055
    %v2260 = vpack.c.b16 %v2062, %v2056
    %v2261 = vpack.c.b16 %v2063, %v2057
    %v2262 = vpack.c.b16 %v2064, %v2058
    %v2263 = vpack.c.b16 %v2065, %v2059
    %v2264 = vpack.c.b16 %v2066, %v2060
    %v2265 = vpack.c.b16 %v2073, %v2067
    %v2266 = vpack.c.b16 %v2074, %v2068
    %v2267 = vpack.c.b16 %v2075, %v2069
    %v2268 = vpack.c.b16 %v2076, %v2070
    %v2269 = vpack.c.b16 %v2077, %v2071
    %v2270 = vpack.c.b16 %v2078, %v2072
    %v2271 = vpack.c.b16 %v2085, %v2079
    %v2272 = vpack.c.b16 %v2086, %v2080
    %v2273 = vpack.c.b16 %v2087, %v2081
    %v2274 = vpack.c.b16 %v2088, %v2082
    %v2275 = vpack.c.b16 %v2089, %v2083
    %v2276 = vpack.c.b16 %v2090, %v2084
    %v2277 = vpack.c.b16 %v2097, %v2091
    %v2278 = vpack.c.b16 %v2098, %v2092
    %v2279 = vpack.c.b16 %v2099, %v2093
    %v2280 = vpack.c.b16 %v2100, %v2094
    %v2281 = vpack.c.b16 %v2101, %v2095
    %v2282 = vpack.c.b16 %v2102, %v2096
    %v2283 = vpack.c.b16 %v2109, %v2103
    %v2284 = vpack.c.b16 %v2110, %v2104
    %v2285 = vpack.c.b16 %v2111, %v2105
    %v2286 = vpack.c.b16 %v2112, %v2106
    %v2287 = vpack.c.b16 %v2113, %v2107
    %v2288 = vpack.c.b16 %v2114, %v2108
    %v2289 = vpack.c.b16 %v2121, %v2115
    %v2290 = vpack.c.b16 %v2122, %v2116
    %v2291 = vpack.c.b16 %v2123, %v2117
    %v2292 = vpack.c.b16 %v2124, %v2118
    %v2293 = vpack.c.b16 %v2125, %v2119
    %v2294 = vpack.c.b16 %v2126, %v2120
    %v2295 = vpack.c.b16 %v2133, %v2127
    %v2296 = vpack.c.b16 %v2134, %v2128
    %v2297 = vpack.c.b16 %v2135, %v2129
    %v2298 = vpack.c.b16 %v2136, %v2130
    %v2299 = vpack.c.b16 %v2137, %v2131
    %v2300 = vpack.c.b16 %v2138, %v2132
    %v2301 = vpack.c.b16 %v2145, %v2139
    %v2302 = vpack.c.b16 %v2146, %v2140
    %v2303 = vpack.c.b16 %v2147, %v2141
    %v2304 = vpack.c.b16 %v2148, %v2142
    %v2305 = vpack.c.b16 %v2149, %v2143
    %v2306 = vpack.c.b16 %v2150, %v2144
    %v2307 = vpack.c.b16 %v2157, %v2151
    %v2308 = vpack.c.b16 %v2158, %v2152
    %v2309 = vpack.c.b16 %v2159, %v2153
    %v2310 = vpack.c.b16 %v2160, %v2154
    %v2311 = vpack.c.b16 %v2161, %v2155
    %v2312 = vpack.c.b16 %v2162, %v2156
    %v2313 = vpack.c.b16 %v2169, %v2163
    %v2314 = vpack.c.b16 %v2170, %v2164
    %v2315 = vpack.c.b16 %v2171, %v2165
    %v2316 = vpack.c.b16 %v2172, %v2166
    %v2317 = vpack.c.b16 %v2173, %v2167
    %v2318 = vpack.c.b16 %v2174, %v2168
    %2463 = vmatprep.subr.bf16.mxu0 %v2176
    %2464 = vmatpush1.bf16.msra.mxu0 %v2175
    %2465 = vmatprep.subr.bf16.mxu0 %v2182
    %2466 = vmatpush1.bf16.msra.mxu0 %v2181
    %2467 = vmatprep.subr.bf16.mxu0 %v2188
    %2468 = vmatpush1.bf16.msra.mxu0 %v2187
    %2469 = vmatprep.subr.bf16.mxu0 %v2194
    %2470 = vmatpush1.bf16.msra.mxu0 %v2193
    %2471 = vmatprep.subr.bf16.mxu0 %v2200
    %2472 = vmatpush1.bf16.msra.mxu0 %v2199
    %2473 = vmatprep.subr.bf16.mxu0 %v2206
    %2474 = vmatpush1.bf16.msra.mxu0 %v2205
    %2475 = vmatprep.subr.bf16.mxu0 %v2212
    %2476 = vmatpush1.bf16.msra.mxu0 %v2211
    %2477 = vmatprep.subr.bf16.mxu0 %v2218
    %2478 = vmatpush1.bf16.msra.mxu0 %v2217
    %2479 = vmatprep.subr.bf16.mxu0 %v2224
    %2480 = vmatpush1.bf16.msra.mxu0 %v2223
    %2481 = vmatprep.subr.bf16.mxu0 %v2230
    %2482 = vmatpush1.bf16.msra.mxu0 %v2229
    %2483 = vmatprep.subr.bf16.mxu0 %v2236
    %2484 = vmatpush1.bf16.msra.mxu0 %v2235
    %2485 = vmatprep.subr.bf16.mxu0 %v2242
    %2486 = vmatpush1.bf16.msra.mxu0 %v2241
    %2487 = vmatprep.subr.bf16.mxu0 %v2248
    %2488 = vmatpush1.bf16.msra.mxu0 %v2247
    %2489 = vmatprep.subr.bf16.mxu0 %v2254
    %2490 = vmatpush1.bf16.msra.mxu0 %v2253
    %2491 = vmatprep.subr.bf16.mxu0 %v2260
    %2492 = vmatpush1.bf16.msra.mxu0 %v2259
    %2493 = vmatprep.subr.bf16.mxu0 %v2266
    %2494 = vmatpush1.bf16.msra.mxu0 %v2265
    %2495 = vmatprep.mubr.bf16.mxu0 %v1381
    %2496 = vmatmul.mubr.bf16.gmra.mrb[0].mxu0 %v1380
    %v2497 = vpop.f32.mrb[0].mxu0
    %v2498 = vadd.f32 %v1655, %v2497
    %v2499 = vpop.f32.mrb[0].mxu0
    %v2500 = vadd.f32 %v1657, %v2499
    %v2501 = vpop.f32.mrb[0].mxu0
    %v2502 = vpop.f32.mrb[0].mxu0
    %2503 = vdwg.mxu0
    %2504 = vmatprep.subr.bf16.mxu0 %v2272
    %2505 = vmatpush1.bf16.msra.mxu0 %v2271
    %2506 = vmatprep.subr.bf16.mxu0 %v2278
    %2507 = vmatpush1.bf16.msra.mxu0 %v2277
    %2508 = vmatprep.subr.bf16.mxu0 %v2284
    %2509 = vmatpush1.bf16.msra.mxu0 %v2283
    %2510 = vmatprep.subr.bf16.mxu0 %v2290
    %2511 = vmatpush1.bf16.msra.mxu0 %v2289
    %2512 = vmatprep.subr.bf16.mxu0 %v2296
    %2513 = vmatpush1.bf16.msra.mxu0 %v2295
    %2514 = vmatprep.subr.bf16.mxu0 %v2302
    %2515 = vmatpush1.bf16.msra.mxu0 %v2301
    %2516 = vmatprep.subr.bf16.mxu0 %v2308
    %2517 = vmatpush1.bf16.msra.mxu0 %v2307
    %2518 = vmatprep.subr.bf16.mxu0 %v2314
    %2519 = vmatpush1.bf16.msra.mxu0 %v2313
    %2520 = vmatprep.subr.bf16.mxu0 0
    %2521 = vmatpush1.bf16.msra.mxu0 0
    %2522 = vmatprep.subr.bf16.mxu0 0
    %2523 = vmatpush1.bf16.msra.mxu0 0
    %2524 = vmatprep.subr.bf16.mxu0 0
    %2525 = vmatpush1.bf16.msra.mxu0 0
    %2526 = vmatprep.subr.bf16.mxu0 0
    %2527 = vmatpush1.bf16.msra.mxu0 0
    %2528 = vmatprep.subr.bf16.mxu0 0
    %2529 = vmatpush1.bf16.msra.mxu0 0
    %2530 = vmatprep.subr.bf16.mxu0 0
    %2531 = vmatpush1.bf16.msra.mxu0 0
    %2532 = vmatprep.subr.bf16.mxu0 0
    %2533 = vmatpush1.bf16.msra.mxu0 0
    %2534 = vmatprep.subr.bf16.mxu0 0
    %2535 = vmatpush1.bf16.msra.mxu0 0
    %2536 = vmatprep.mubr.bf16.mxu0 0
    %2537 = vmatmul.mubr.bf16.gmra.mrb[0].mxu0 %v1382
    %v2538 = vpop.f32.mrb[0].mxu0
    %v2539 = vadd.f32 %v2498, %v2538
    %v2540 = vpop.f32.mrb[0].mxu0
    %v2541 = vadd.f32 %v2500, %v2540
    %v2542 = vpop.f32.mrb[0].mxu0
    %v2543 = vpop.f32.mrb[0].mxu0
    %2544 = vdwg.mxu0
    %2545 = vmatprep.subr.bf16.mxu0 %v2178
    %2546 = vmatpush1.bf16.msra.mxu0 %v2177
    %2547 = vmatprep.subr.bf16.mxu0 %v2184
    %2548 = vmatpush1.bf16.msra.mxu0 %v2183
    %2549 = vmatprep.subr.bf16.mxu0 %v2190
    %2550 = vmatpush1.bf16.msra.mxu0 %v2189
    %2551 = vmatprep.subr.bf16.mxu0 %v2196
    %2552 = vmatpush1.bf16.msra.mxu0 %v2195
    %2553 = vmatprep.subr.bf16.mxu0 %v2202
    %2554 = vmatpush1.bf16.msra.mxu0 %v2201
    %2555 = vmatprep.subr.bf16.mxu0 %v2208
    %2556 = vmatpush1.bf16.msra.mxu0 %v2207
    %2557 = vmatprep.subr.bf16.mxu0 %v2214
    %2558 = vmatpush1.bf16.msra.mxu0 %v2213
    %2559 = vmatprep.subr.bf16.mxu0 %v2220
    %2560 = vmatpush1.bf16.msra.mxu0 %v2219
    %2561 = vmatprep.subr.bf16.mxu0 %v2226
    %2562 = vmatpush1.bf16.msra.mxu0 %v2225
    %2563 = vmatprep.subr.bf16.mxu0 %v2232
    %2564 = vmatpush1.bf16.msra.mxu0 %v2231
    %2565 = vmatprep.subr.bf16.mxu0 %v2238
    %2566 = vmatpush1.bf16.msra.mxu0 %v2237
    %2567 = vmatprep.subr.bf16.mxu0 %v2244
    %2568 = vmatpush1.bf16.msra.mxu0 %v2243
    %2569 = vmatprep.subr.bf16.mxu0 %v2250
    %2570 = vmatpush1.bf16.msra.mxu0 %v2249
    %2571 = vmatprep.subr.bf16.mxu0 %v2256
    %2572 = vmatpush1.bf16.msra.mxu0 %v2255
    %2573 = vmatprep.subr.bf16.mxu0 %v2262
    %2574 = vmatpush1.bf16.msra.mxu0 %v2261
    %2575 = vmatprep.subr.bf16.mxu0 %v2268
    %2576 = vmatpush1.bf16.msra.mxu0 %v2267
    %2577 = vmatprep.mubr.bf16.mxu0 %v1381
    %2578 = vmatmul.mubr.bf16.gmra.mrb[0].mxu0 %v1380
    %v2579 = vpop.f32.mrb[0].mxu0
    %v2580 = vadd.f32 %v1696, %v2579
    %v2581 = vpop.f32.mrb[0].mxu0
    %v2582 = vadd.f32 %v1698, %v2581
    %v2583 = vpop.f32.mrb[0].mxu0
    %v2584 = vpop.f32.mrb[0].mxu0
    %2585 = vdwg.mxu0
    %2586 = vmatprep.subr.bf16.mxu0 %v2274
    %2587 = vmatpush1.bf16.msra.mxu0 %v2273
    %2588 = vmatprep.subr.bf16.mxu0 %v2280
    %2589 = vmatpush1.bf16.msra.mxu0 %v2279
    %2590 = vmatprep.subr.bf16.mxu0 %v2286
    %2591 = vmatpush1.bf16.msra.mxu0 %v2285
    %2592 = vmatprep.subr.bf16.mxu0 %v2292
    %2593 = vmatpush1.bf16.msra.mxu0 %v2291
    %2594 = vmatprep.subr.bf16.mxu0 %v2298
    %2595 = vmatpush1.bf16.msra.mxu0 %v2297
    %2596 = vmatprep.subr.bf16.mxu0 %v2304
    %2597 = vmatpush1.bf16.msra.mxu0 %v2303
    %2598 = vmatprep.subr.bf16.mxu0 %v2310
    %2599 = vmatpush1.bf16.msra.mxu0 %v2309
    %2600 = vmatprep.subr.bf16.mxu0 %v2316
    %2601 = vmatpush1.bf16.msra.mxu0 %v2315
    %2602 = vmatprep.subr.bf16.mxu0 0
    %2603 = vmatpush1.bf16.msra.mxu0 0
    %2604 = vmatprep.subr.bf16.mxu0 0
    %2605 = vmatpush1.bf16.msra.mxu0 0
    %2606 = vmatprep.subr.bf16.mxu0 0
    %2607 = vmatpush1.bf16.msra.mxu0 0
    %2608 = vmatprep.subr.bf16.mxu0 0
    %2609 = vmatpush1.bf16.msra.mxu0 0
    %2610 = vmatprep.subr.bf16.mxu0 0
    %2611 = vmatpush1.bf16.msra.mxu0 0
    %2612 = vmatprep.subr.bf16.mxu0 0
    %2613 = vmatpush1.bf16.msra.mxu0 0
    %2614 = vmatprep.subr.bf16.mxu0 0
    %2615 = vmatpush1.bf16.msra.mxu0 0
    %2616 = vmatprep.subr.bf16.mxu0 0
    %2617 = vmatpush1.bf16.msra.mxu0 0
    %2618 = vmatprep.mubr.bf16.mxu0 0
    %2619 = vmatmul.mubr.bf16.gmra.mrb[0].mxu0 %v1382
    %v2620 = vpop.f32.mrb[0].mxu0
    %v2621 = vadd.f32 %v2580, %v2620
    %v2622 = vpop.f32.mrb[0].mxu0
    %v2623 = vadd.f32 %v2582, %v2622
    %v2624 = vpop.f32.mrb[0].mxu0
    %v2625 = vpop.f32.mrb[0].mxu0
    %2626 = vdwg.mxu0
    %2627 = vmatprep.subr.bf16.mxu0 %v2180
    %2628 = vmatpush1.bf16.msra.mxu0 %v2179
    %2629 = vmatprep.subr.bf16.mxu0 %v2186
    %2630 = vmatpush1.bf16.msra.mxu0 %v2185
    %2631 = vmatprep.subr.bf16.mxu0 %v2192
    %2632 = vmatpush1.bf16.msra.mxu0 %v2191
    %2633 = vmatprep.subr.bf16.mxu0 %v2198
    %2634 = vmatpush1.bf16.msra.mxu0 %v2197
    %2635 = vmatprep.subr.bf16.mxu0 %v2204
    %2636 = vmatpush1.bf16.msra.mxu0 %v2203
    %2637 = vmatprep.subr.bf16.mxu0 %v2210
    %2638 = vmatpush1.bf16.msra.mxu0 %v2209
    %2639 = vmatprep.subr.bf16.mxu0 %v2216
    %2640 = vmatpush1.bf16.msra.mxu0 %v2215
    %2641 = vmatprep.subr.bf16.mxu0 %v2222
    %2642 = vmatpush1.bf16.msra.mxu0 %v2221
    %2643 = vmatprep.subr.bf16.mxu0 %v2228
    %2644 = vmatpush1.bf16.msra.mxu0 %v2227
    %2645 = vmatprep.subr.bf16.mxu0 %v2234
    %2646 = vmatpush1.bf16.msra.mxu0 %v2233
    %2647 = vmatprep.subr.bf16.mxu0 %v2240
    %2648 = vmatpush1.bf16.msra.mxu0 %v2239
    %2649 = vmatprep.subr.bf16.mxu0 %v2246
    %2650 = vmatpush1.bf16.msra.mxu0 %v2245
    %2651 = vmatprep.subr.bf16.mxu0 %v2252
    %2652 = vmatpush1.bf16.msra.mxu0 %v2251
    %2653 = vmatprep.subr.bf16.mxu0 %v2258
    %2654 = vmatpush1.bf16.msra.mxu0 %v2257
    %2655 = vmatprep.subr.bf16.mxu0 %v2264
    %2656 = vmatpush1.bf16.msra.mxu0 %v2263
    %2657 = vmatprep.subr.bf16.mxu0 %v2270
    %2658 = vmatpush1.bf16.msra.mxu0 %v2269
    %2659 = vmatprep.mubr.bf16.mxu0 %v1381
    %2660 = vmatmul.mubr.bf16.gmra.mrb[0].mxu0 %v1380
    %v2661 = vpop.f32.mrb[0].mxu0
    %v2662 = vadd.f32 %v1737, %v2661
    %v2663 = vpop.f32.mrb[0].mxu0
    %v2664 = vadd.f32 %v1739, %v2663
    %v2665 = vpop.f32.mrb[0].mxu0
    %v2666 = vpop.f32.mrb[0].mxu0
    %2667 = vdwg.mxu0
    %2668 = vmatprep.subr.bf16.mxu0 %v2276
    %2669 = vmatpush1.bf16.msra.mxu0 %v2275
    %2670 = vmatprep.subr.bf16.mxu0 %v2282
    %2671 = vmatpush1.bf16.msra.mxu0 %v2281
    %2672 = vmatprep.subr.bf16.mxu0 %v2288
    %2673 = vmatpush1.bf16.msra.mxu0 %v2287
    %2674 = vmatprep.subr.bf16.mxu0 %v2294
    %2675 = vmatpush1.bf16.msra.mxu0 %v2293
    %2676 = vmatprep.subr.bf16.mxu0 %v2300
    %2677 = vmatpush1.bf16.msra.mxu0 %v2299
    %2678 = vmatprep.subr.bf16.mxu0 %v2306
    %2679 = vmatpush1.bf16.msra.mxu0 %v2305
    %2680 = vmatprep.subr.bf16.mxu0 %v2312
    %2681 = vmatpush1.bf16.msra.mxu0 %v2311
    %2682 = vmatprep.subr.bf16.mxu0 %v2318
    %2683 = vmatpush1.bf16.msra.mxu0 %v2317
    %2684 = vmatprep.subr.bf16.mxu0 0
    %2685 = vmatpush1.bf16.msra.mxu0 0
    %2686 = vmatprep.subr.bf16.mxu0 0
    %2687 = vmatpush1.bf16.msra.mxu0 0
    %2688 = vmatprep.subr.bf16.mxu0 0
    %2689 = vmatpush1.bf16.msra.mxu0 0
    %2690 = vmatprep.subr.bf16.mxu0 0
    %2691 = vmatpush1.bf16.msra.mxu0 0
    %2692 = vmatprep.subr.bf16.mxu0 0
    %2693 = vmatpush1.bf16.msra.mxu0 0
    %2694 = vmatprep.subr.bf16.mxu0 0
    %2695 = vmatpush1.bf16.msra.mxu0 0
    %2696 = vmatprep.subr.bf16.mxu0 0
    %2697 = vmatpush1.bf16.msra.mxu0 0
    %2698 = vmatprep.subr.bf16.mxu0 0
    %2699 = vmatpush1.bf16.msra.mxu0 0
    %2700 = vmatprep.mubr.bf16.mxu0 0
    %2701 = vmatmul.mubr.bf16.gmra.mrb[0].mxu0 %v1382
    %v2702 = vpop.f32.mrb[0].mxu0
    %v2703 = vadd.f32 %v2662, %v2702
    %v2704 = vpop.f32.mrb[0].mxu0
    %v2705 = vadd.f32 %v2664, %v2704
    %v2706 = vpop.f32.mrb[0].mxu0
    %v2707 = vpop.f32.mrb[0].mxu0
    %2708 = vdwg.mxu0
    %v2709 = vld [vmem:[%s6] sm:$0x3f]
    %v2711 = vlaneseq
    %v2712 = vshrl.u32 %v2711, 7
    %v2713 = vsub.s32 0, %v2712
    %v2714 = vrot.slane %v2709, %v2713
    %v2715 = vlaneseq
    %v2716 = vshrl.u32 %v2715, 7
    %v2717 = vsub.s32 1, %v2716
    %v2718 = vrot.slane %v2709, %v2717
    %v2719 = vlaneseq
    %v2720 = vshrl.u32 %v2719, 7
    %v2721 = vsub.s32 2, %v2720
    %v2722 = vrot.slane %v2709, %v2721
    %v2723 = vlaneseq
    %v2724 = vshrl.u32 %v2723, 7
    %v2725 = vsub.s32 3, %v2724
    %v2726 = vrot.slane %v2709, %v2725
    %v2727 = vlaneseq
    %v2728 = vshrl.u32 %v2727, 7
    %v2729 = vsub.s32 4, %v2728
    %v2730 = vrot.slane %v2709, %v2729
    %v2731 = vlaneseq
    %v2732 = vshrl.u32 %v2731, 7
    %v2733 = vsub.s32 5, %v2732
    %v2734 = vrot.slane %v2709, %v2733
    %v2741 = vadd.f32 %v2539, %v2714
    %v2742 = vadd.f32 %v2541, %v2718
    %v2743 = vadd.f32 %v2621, %v2722
    %v2744 = vadd.f32 %v2623, %v2726
    %v2745 = vadd.f32 %v2703, %v2730
    %v2746 = vadd.f32 %v2705, %v2734
    %v2753 = vcombine.low %v2741, %v2742
    %v2754 = vcombine.low %v2743, %v2744
    %v2756 = vunpack.c.l.s4 1983009808
    %v2757 = vunpack.c.0.s8 %v2756
    %v2758 = vlaneseq
    %v2759 = vshrl.u32 %v2758, 7
    %v2760 = vsub.s32 %v2757, %v2759
    %v2761 = vrot.slane %v2753, %v2760
    %v2763 = vunpack.c.l.s4 1983009808
    %v2764 = vunpack.c.0.s8 %v2763
    %v2765 = vlaneseq
    %v2766 = vshrl.u32 %v2765, 7
    %v2767 = vsub.s32 %v2764, %v2766
    %v2768 = vrot.slane %v2754, %v2767
    %v2769 = vcombine.low %v2761, %v2768
    %v2770 = vcombine.low %v2745, %v2746
    %v2772 = vunpack.c.l.s4 1983009808
    %v2773 = vunpack.c.0.s8 %v2772
    %v2774 = vlaneseq
    %v2775 = vshrl.u32 %v2774, 7
    %v2776 = vsub.s32 %v2773, %v2775
    %v2777 = vrot.slane %v2770, %v2776
    %2780 = vst [vmem:[#allocation11] sm:$0xff] %v2769
    %2781 = vst [vmem:[#allocation11 + $0x8] sm:$0xf] %v2777
    // Predicated region
    $region46: #{tpu_custom_call.1} parent=1 // pred_check
      _
    $region47: #{tpu_custom_call.1} parent=1 // pred_check_branch
      %2783 = sbr.rel (0) target = $region49
    $region48: #{tpu_custom_call.1} parent=1 // pred_region
      %s2785 = ssub.s32 96, 96
      %2786 = vsyncadd [#allocation4], %s2785
      %s2788 = sshll.u32 [#allocation10], 4
      %s2789 = int_to_ptr.vmem [resolvable:$true] %s2788
      %2791 = dma.vmem_to_hbm [thread:$0]  %s2789, 96, %s7, [#allocation4]
    $region49: #{tpu_custom_call.1} parent=1 // pred_fallthru
      _
    // Predicated region
    $region50: #{tpu_custom_call.1} parent=1 // pred_check
      _
    $region51: #{tpu_custom_call.1} parent=1 // pred_check_branch
      %2793 = sbr.rel (0) target = $region53
    $region52: #{tpu_custom_call.1} parent=1 // pred_region
      %s2795 = ssub.s32 192, 192
      %2796 = vsyncadd [#allocation12], %s2795
      %s2798 = sshll.u32 [#allocation11], 4
      %s2799 = int_to_ptr.vmem [resolvable:$true] %s2798
      %2801 = dma.vmem_to_hbm [thread:$0]  %s2799, 192, %s8, [#allocation12]
    $region53: #{tpu_custom_call.1} parent=1 // pred_fallthru
      _
    // Predicated region
    $region54: #{tpu_custom_call.1} parent=1 // pred_check
      _
    $region55: #{tpu_custom_call.1} parent=1 // pred_check_branch
      %2803 = sbr.rel (0) target = $region57
    $region56: #{tpu_custom_call.1} parent=1 // pred_region
      %2804 = dma.done [#allocation4], 96
    $region57: #{tpu_custom_call.1} parent=1 // pred_fallthru
      _
    // Predicated region
    $region58: #{tpu_custom_call.1} parent=1 // pred_check
      _
    $region59: #{tpu_custom_call.1} parent=1 // pred_check_branch
      %2806 = sbr.rel (0) target = $region61
    $region60: #{tpu_custom_call.1} parent=1 // pred_region
      %2807 = dma.done [#allocation12], 192
    $region61: #{tpu_custom_call.1} parent=1 // pred_fallthru
      _
    %2808 = vsyncpa [#allocation3], 1
    %2809 = vsyncpa [#allocation6], 1
    %2810 = vsyncpa [#allocation9], 1
    %2811 = vsyncpa [#allocation4], 1
    %2812 = vsyncpa [#allocation12], 1

</llo_original>
